<compile_context>
chip_gen: v5e
topology: v5e:2x2
jax: 0.10.0
libtpu: 0.0.40
codegen_flags: <defaults>
</compile_context>

<pallas_src>
import math
import functools

import jax
import jax.numpy as jnp
from jax import lax
from jax.experimental import pallas as pl
from jax.experimental.pallas import tpu as pltpu


# ----------------------------- in-kernel math helpers -----------------------------

def _layernorm(x, gamma, beta, eps=1e-5):
    # matches PyTorch: mean / biased var over last axis, then scale * norm + shift
    mean = jnp.mean(x, axis=-1, keepdims=True)
    var = jnp.mean((x - mean) ** 2, axis=-1, keepdims=True)
    norm = (x - mean) * lax.rsqrt(var + eps)          # EUP rsqrt, no VALU divide
    return gamma * norm + beta


def _gelu(x):
    # tanh approximation, exactly as in the PyTorch GELU module
    c = math.sqrt(2.0 / math.pi)
    return 0.5 * x * (1.0 + jnp.tanh(c * (x + 0.044715 * (x ** 3))))


# ----------------------------------- kernel ---------------------------------------

def transformer_block_kernel(
    x_ref,                     # (1, T, D)  f32
    wqkv_ref,                  # (D, 3D)    bf16  fused [Wq | Wk | Wv], qkv_bias=False
    wo_ref, bo_ref,            # (D, D) bf16, (1, D) f32
    w1_ref, b1_ref,            # (D, 4D) bf16, (1, 4D) f32
    w2_ref, b2_ref,            # (4D, D) bf16, (1, D) f32
    g1_ref, s1_ref,            # (1, D) f32  LayerNorm-1 scale / shift
    g2_ref, s2_ref,            # (1, D) f32  LayerNorm-2 scale / shift
    out_ref,                   # (1, T, D)  f32
    *, num_heads, head_dim,
):
    x = x_ref[0]                                   # (T, D)
    T, D = x.shape

    # ------------------ LayerNorm 1 (f32 elementwise) ------------------
    h = _layernorm(x, g1_ref[...], s1_ref[...])

    # ------------------ fused QKV projection (bf16 MXU, f32 accum) ------------------
    qkv = jnp.dot(h.astype(jnp.bfloat16), wqkv_ref[...],
                  preferred_element_type=jnp.float32)          # (T, 3D)

    inv_sqrt_hd = 1.0 / math.sqrt(head_dim)
    q = qkv[:, 0:D] * inv_sqrt_hd                  # fold 1/sqrt(hd) into q once
    k = qkv[:, D:2 * D]
    v = qkv[:, 2 * D:3 * D]

    # (T, D) -> (H, T, hd): head-batched layout for dense MXU contractions
    q3 = jnp.transpose(q.reshape(T, num_heads, head_dim), (1, 0, 2)).astype(jnp.bfloat16)
    k3 = jnp.transpose(k.reshape(T, num_heads, head_dim), (1, 0, 2)).astype(jnp.bfloat16)
    v3 = jnp.transpose(v.reshape(T, num_heads, head_dim), (1, 0, 2)).astype(jnp.bfloat16)

    # ------------------ causal attention, all heads in one batched contraction ------------------
    scores = jnp.einsum("htd,hsd->hts", q3, k3,
                        preferred_element_type=jnp.float32)    # (H, T, T) f32

    row = lax.broadcasted_iota(jnp.int32, (T, T), 0)
    col = lax.broadcasted_iota(jnp.int32, (T, T), 1)
    causal = (col > row)[None]                                 # (1, T, T) -> broadcast over H
    scores = jnp.where(causal, jnp.float32(-1e30), scores)     # finite mask: no NaN risk

    m = jnp.max(scores, axis=-1, keepdims=True)
    e = jnp.exp(scores - m)
    denom = jnp.sum(e, axis=-1, keepdims=True)
    attn = e * pl.reciprocal(denom, approx=True)               # f32 softmax, EUP reciprocal
    # TODO(synk): attention-weight dropout is identity in eval mode.

    ctx3 = jnp.einsum("hts,hsd->htd", attn.astype(jnp.bfloat16), v3,
                      preferred_element_type=jnp.float32)      # (H, T, hd)
    ctx = jnp.transpose(ctx3, (1, 0, 2)).reshape(T, D)         # (T, D), kept in registers

    attn_out = jnp.dot(ctx.astype(jnp.bfloat16), wo_ref[...],
                       preferred_element_type=jnp.float32) + bo_ref[...]

    # residual 1 (drop_resid is identity)
    x1 = x + attn_out

    # ------------------ LayerNorm 2 + FeedForward ------------------
    h2 = _layernorm(x1, g2_ref[...], s2_ref[...])
    ff = jnp.dot(h2.astype(jnp.bfloat16), w1_ref[...],
                 preferred_element_type=jnp.float32) + b1_ref[...]
    ff = _gelu(ff)
    ff = jnp.dot(ff.astype(jnp.bfloat16), w2_ref[...],
                 preferred_element_type=jnp.float32) + b2_ref[...]

    # residual 2 (drop_resid is identity)
    out_ref[0] = x1 + ff


# ----------------------------------- wrapper ---------------------------------------

def transformer_block(x, params, num_heads):
    B, T, D = x.shape
    head_dim = D // num_heads

    (wq, wk, wv, wo, bo, w1, b1, w2, b2, g1, s1, g2, s2) = params

    # Fuse QKV into one (D, 3D) weight and cast all matmul weights to bf16 once.
    wqkv = jnp.concatenate([wq, wk, wv], axis=1).astype(jnp.bfloat16)
    wo_b = wo.astype(jnp.bfloat16)
    w1_b = w1.astype(jnp.bfloat16)
    w2_b = w2.astype(jnp.bfloat16)

    def full_spec(arr):
        zeros = (0,) * arr.ndim
        return pl.BlockSpec(arr.shape, lambda b, _z=zeros: _z)

    kernel = functools.partial(
        transformer_block_kernel, num_heads=num_heads, head_dim=head_dim
    )

    return pl.pallas_call(
        kernel,
        out_shape=jax.ShapeDtypeStruct((B, T, D), jnp.float32),
        grid=(B,),
        in_specs=[
            pl.BlockSpec((1, T, D), lambda b: (b, 0, 0)),   # x
            full_spec(wqkv),
            full_spec(wo_b), full_spec(bo),
            full_spec(w1_b), full_spec(b1),
            full_spec(w2_b), full_spec(b2),
            full_spec(g1), full_spec(s1),
            full_spec(g2), full_spec(s2),
        ],
        out_specs=pl.BlockSpec((1, T, D), lambda b: (b, 0, 0)),
        compiler_params=pltpu.CompilerParams(dimension_semantics=("parallel",)),
    )(x, wqkv, wo_b, bo, w1_b, b1, w2_b, b2, g1, s1, g2, s2)


# ----------------------------- pure-JAX reference (f32) -----------------------------

def transformer_block_ref(x, params, num_heads):
    (wq, wk, wv, wo, bo, w1, b1, w2, b2, g1, s1, g2, s2) = params
    B, T, D = x.shape
    head_dim = D // num_heads

    def ln(v, g, s):
        mean = jnp.mean(v, axis=-1, keepdims=True)
        var = jnp.mean((v - mean) ** 2, axis=-1, keepdims=True)
        return g * ((v - mean) / jnp.sqrt(var + 1e-5)) + s

    h = ln(x, g1, s1)
    q = h @ wq
    k = h @ wk
    v = h @ wv
    q = q.reshape(B, T, num_heads, head_dim).transpose(0, 2, 1, 3)
    k = k.reshape(B, T, num_heads, head_dim).transpose(0, 2, 1, 3)
    v = v.reshape(B, T, num_heads, head_dim).transpose(0, 2, 1, 3)
    scores = jnp.einsum("bhqd,bhkd->bhqk", q, k)
    mask = jnp.triu(jnp.ones((T, T), bool), k=1)
    scores = jnp.where(mask[None, None], -jnp.inf, scores) / math.sqrt(head_dim)
    w = jax.nn.softmax(scores, axis=-1)
    ctx = jnp.einsum("bhqk,bhkd->bhqd", w, v).transpose(0, 2, 1, 3).reshape(B, T, D)
    x1 = x + (ctx @ wo + bo)
    h2 = ln(x1, g2, s2)
    c = math.sqrt(2.0 / math.pi)
    ff = h2 @ w1 + b1
    ff = 0.5 * ff * (1.0 + jnp.tanh(c * (ff + 0.044715 * ff ** 3)))
    ff = ff @ w2 + b2
    return x1 + ff


# ----------------------------------- main ---------------------------------------

if __name__ == "__main__":
    # cfg: emb_dim=32, ctx_len=8, n_heads=4, drop_rate=0.0, qkv_bias=False
    B, T, D, H = 2, 8, 32, 4
    H4 = 4 * D

    key = jax.random.PRNGKey(0)
    keys = jax.random.split(key, 10)

    x = jax.random.normal(keys[0], (B, T, D), jnp.float32)

    # PyTorch nn.Linear stores (out, in); generate that way then transpose to (in, out).
    def linear_w(k, out_f, in_f):
        return (0.02 * jax.random.normal(k, (out_f, in_f), jnp.float32)).T

    wq = linear_w(keys[1], D, D)
    wk = linear_w(keys[2], D, D)
    wv = linear_w(keys[3], D, D)
    wo = linear_w(keys[4], D, D)
    bo = (0.02 * jax.random.normal(keys[5], (D,), jnp.float32)).reshape(1, D)
    w1 = linear_w(keys[6], H4, D)
    b1 = (0.02 * jax.random.normal(keys[7], (H4,), jnp.float32)).reshape(1, H4)
    w2 = linear_w(keys[8], D, H4)
    b2 = (0.02 * jax.random.normal(keys[9], (D,), jnp.float32)).reshape(1, D)
    g1 = jnp.ones((1, D), jnp.float32)
    s1 = jnp.zeros((1, D), jnp.float32)
    g2 = jnp.ones((1, D), jnp.float32)
    s2 = jnp.zeros((1, D), jnp.float32)

    params = (wq, wk, wv, wo, bo, w1, b1, w2, b2, g1, s1, g2, s2)

    out = transformer_block(x, params, num_heads=H)
    out = jax.block_until_ready(out)

    ref = transformer_block_ref(x, params, num_heads=H)
    assert out.shape == (B, T, D)
    # bf16 MXU inputs (f32 accumulation) + approx EUP reciprocal vs. the all-f32 reference.
    assert jnp.allclose(out, ref, atol=1e-2, rtol=1e-2), "mismatch vs pure-JAX reference"

    print("KERNEL_OK")
</pallas_src>

<mosaic_0001>
module attributes {stable_mosaic.version = 11 : i64} {
  func.func @transformer_block_kernel(%arg0: i32, %arg1: memref<1x8x32xf32, #tpu.memory_space<vmem>>, %arg2: memref<32x96xbf16, #tpu.memory_space<vmem>>, %arg3: memref<32x32xbf16, #tpu.memory_space<vmem>>, %arg4: memref<1x32xf32, #tpu.memory_space<vmem>>, %arg5: memref<32x128xbf16, #tpu.memory_space<vmem>>, %arg6: memref<1x128xf32, #tpu.memory_space<vmem>>, %arg7: memref<128x32xbf16, #tpu.memory_space<vmem>>, %arg8: memref<1x32xf32, #tpu.memory_space<vmem>>, %arg9: memref<1x32xf32, #tpu.memory_space<vmem>>, %arg10: memref<1x32xf32, #tpu.memory_space<vmem>>, %arg11: memref<1x32xf32, #tpu.memory_space<vmem>>, %arg12: memref<1x32xf32, #tpu.memory_space<vmem>>, %arg13: memref<1x8x32xf32, #tpu.memory_space<vmem>>) attributes {dimension_semantics = [#tpu.dimension_semantics<parallel>], iteration_bounds = array<i64: 2>, scalar_prefetch = 0 : i64, scratch_operands = 0 : i64, tpu.core_type = #tpu.core_type<tc>, window_params = [{transform_indices = @transform_0, window_bounds = array<i64: 1, 8, 32>}, {pipeline_mode = #tpu.pipeline_mode<synchronous>, transform_indices = @transform_1, window_bounds = array<i64: 32, 96>}, {pipeline_mode = #tpu.pipeline_mode<synchronous>, transform_indices = @transform_2, window_bounds = array<i64: 32, 32>}, {pipeline_mode = #tpu.pipeline_mode<synchronous>, transform_indices = @transform_3, window_bounds = array<i64: 1, 32>}, {pipeline_mode = #tpu.pipeline_mode<synchronous>, transform_indices = @transform_4, window_bounds = array<i64: 32, 128>}, {pipeline_mode = #tpu.pipeline_mode<synchronous>, transform_indices = @transform_5, window_bounds = array<i64: 1, 128>}, {pipeline_mode = #tpu.pipeline_mode<synchronous>, transform_indices = @transform_6, window_bounds = array<i64: 128, 32>}, {pipeline_mode = #tpu.pipeline_mode<synchronous>, transform_indices = @transform_7, window_bounds = array<i64: 1, 32>}, {pipeline_mode = #tpu.pipeline_mode<synchronous>, transform_indices = @transform_8, window_bounds = array<i64: 1, 32>}, {pipeline_mode = #tpu.pipeline_mode<synchronous>, transform_indices = @transform_9, window_bounds = array<i64: 1, 32>}, {pipeline_mode = #tpu.pipeline_mode<synchronous>, transform_indices = @transform_10, window_bounds = array<i64: 1, 32>}, {pipeline_mode = #tpu.pipeline_mode<synchronous>, transform_indices = @transform_11, window_bounds = array<i64: 1, 32>}, {transform_indices = @transform_12, window_bounds = array<i64: 1, 8, 32>}]} {
    %c0 = arith.constant 0 : index
    %c0_0 = arith.constant 0 : index
    %c0_1 = arith.constant 0 : index
    %0 = vector.load %arg1[%c0, %c0_0, %c0_1] : memref<1x8x32xf32, #tpu.memory_space<vmem>>, vector<1x8x32xf32>
    %1 = vector.shape_cast %0 : vector<1x8x32xf32> to vector<8x32xf32>
    %c0_2 = arith.constant 0 : index
    %c0_3 = arith.constant 0 : index
    %2 = vector.load %arg9[%c0_2, %c0_3] : memref<1x32xf32, #tpu.memory_space<vmem>>, vector<1x32xf32>
    %c0_4 = arith.constant 0 : index
    %c0_5 = arith.constant 0 : index
    %3 = vector.load %arg10[%c0_4, %c0_5] : memref<1x32xf32, #tpu.memory_space<vmem>>, vector<1x32xf32>
    %cst = arith.constant dense<0.000000e+00> : vector<8xf32>
    %4 = vector.multi_reduction <add>, %1, %cst [1] : vector<8x32xf32> to vector<8xf32>
    %5 = vector.shape_cast %4 : vector<8xf32> to vector<8x1xf32>
    %cst_6 = arith.constant 3.200000e+01 : f32
    %6 = vector.broadcast %cst_6 : f32 to vector<8x1xf32>
    %7 = arith.divf %5, %6 : vector<8x1xf32>
    %8 = vector.broadcast %7 : vector<8x1xf32> to vector<8x32xf32>
    %9 = arith.subf %1, %8 : vector<8x32xf32>
    %10 = arith.mulf %9, %9 : vector<8x32xf32>
    %cst_7 = arith.constant dense<0.000000e+00> : vector<8xf32>
    %11 = vector.multi_reduction <add>, %10, %cst_7 [1] : vector<8x32xf32> to vector<8xf32>
    %12 = vector.shape_cast %11 : vector<8xf32> to vector<8x1xf32>
    %cst_8 = arith.constant 3.200000e+01 : f32
    %13 = vector.broadcast %cst_8 : f32 to vector<8x1xf32>
    %14 = arith.divf %12, %13 : vector<8x1xf32>
    %15 = vector.broadcast %7 : vector<8x1xf32> to vector<8x32xf32>
    %16 = arith.subf %1, %15 : vector<8x32xf32>
    %cst_9 = arith.constant 9.99999974E-6 : f32
    %17 = vector.broadcast %cst_9 : f32 to vector<8x1xf32>
    %18 = arith.addf %14, %17 : vector<8x1xf32>
    %19 = math.rsqrt %18 : vector<8x1xf32>
    %20 = vector.broadcast %19 : vector<8x1xf32> to vector<8x32xf32>
    %21 = arith.mulf %16, %20 : vector<8x32xf32>
    %22 = vector.broadcast %2 : vector<1x32xf32> to vector<8x32xf32>
    %23 = arith.mulf %22, %21 : vector<8x32xf32>
    %24 = vector.broadcast %3 : vector<1x32xf32> to vector<8x32xf32>
    %25 = arith.addf %23, %24 : vector<8x32xf32>
    %26 = arith.truncf %25 : vector<8x32xf32> to vector<8x32xbf16>
    %c0_10 = arith.constant 0 : index
    %c0_11 = arith.constant 0 : index
    %27 = vector.load %arg2[%c0_10, %c0_11] : memref<32x96xbf16, #tpu.memory_space<vmem>>, vector<32x96xbf16>
    %cst_12 = arith.constant dense<0.000000e+00> : vector<8x96xf32>
    %28 = tpu.matmul %26, %27, %cst_12 {dimension_numbers = #tpu.dot_dimension_numbers<[1], [0], [0], [1], [0, 0, 1, 1], [], []>} : vector<8x32xbf16>, vector<32x96xbf16>, vector<8x96xf32> -> vector<8x96xf32>
    %29 = vector.extract_strided_slice %28 {offsets = [0, 0], sizes = [8, 32], strides = [1, 1]} : vector<8x96xf32> to vector<8x32xf32>
    %cst_13 = arith.constant 0.353553385 : f32
    %30 = vector.broadcast %cst_13 : f32 to vector<8x32xf32>
    %31 = arith.mulf %29, %30 : vector<8x32xf32>
    %32 = vector.extract_strided_slice %28 {offsets = [0, 32], sizes = [8, 32], strides = [1, 1]} : vector<8x96xf32> to vector<8x32xf32>
    %33 = vector.extract_strided_slice %28 {offsets = [0, 64], sizes = [8, 32], strides = [1, 1]} : vector<8x96xf32> to vector<8x32xf32>
    %34 = vector.shape_cast %31 : vector<8x32xf32> to vector<8x4x8xf32>
    %35 = tpu.transpose %34, [1, 0, 2] : vector<8x4x8xf32> -> vector<4x8x8xf32>
    %36 = arith.truncf %35 : vector<4x8x8xf32> to vector<4x8x8xbf16>
    %37 = vector.shape_cast %32 : vector<8x32xf32> to vector<8x4x8xf32>
    %38 = tpu.transpose %37, [1, 0, 2] : vector<8x4x8xf32> -> vector<4x8x8xf32>
    %39 = arith.truncf %38 : vector<4x8x8xf32> to vector<4x8x8xbf16>
    %40 = vector.shape_cast %33 : vector<8x32xf32> to vector<8x4x8xf32>
    %41 = tpu.transpose %40, [1, 0, 2] : vector<8x4x8xf32> -> vector<4x8x8xf32>
    %42 = arith.truncf %41 : vector<4x8x8xf32> to vector<4x8x8xbf16>
    "tpu.trace_start"() <{level = 10 : i32, message = "htd,hsd->hts"}> : () -> ()
    %cst_14 = arith.constant dense<0.000000e+00> : vector<4x8x8xf32>
    %43 = tpu.matmul %36, %39, %cst_14 {dimension_numbers = #tpu.dot_dimension_numbers<[2], [2], [1], [1], [0, 0, 0, 1, 1, 1], [0], [0]>} : vector<4x8x8xbf16>, vector<4x8x8xbf16>, vector<4x8x8xf32> -> vector<4x8x8xf32>
    "tpu.trace_stop"() : () -> ()
    %44 = tpu.iota {dimensions = array<i32: 0>} : vector<8x8xi32>
    %45 = tpu.iota {dimensions = array<i32: 1>} : vector<8x8xi32>
    %46 = arith.cmpi sgt, %45, %44 : vector<8x8xi32>
    %47 = vector.shape_cast %46 : vector<8x8xi1> to vector<1x8x8xi1>
    %cst_15 = arith.constant -1.000000e+30 : f32
    %48 = vector.shape_cast %47 : vector<1x8x8xi1> to vector<1x8x8xi1>
    %49 = vector.broadcast %48 : vector<1x8x8xi1> to vector<4x8x8xi1>
    %50 = vector.broadcast %cst_15 : f32 to vector<4x8x8xf32>
    %51 = arith.select %49, %50, %43 : vector<4x8x8xi1>, vector<4x8x8xf32>
    %cst_16 = arith.constant dense<0xFF800000> : vector<4x8xf32>
    %52 = vector.multi_reduction <maximumf>, %51, %cst_16 [2] : vector<4x8x8xf32> to vector<4x8xf32>
    %53 = vector.shape_cast %52 : vector<4x8xf32> to vector<4x8x1xf32>
    %54 = vector.broadcast %53 : vector<4x8x1xf32> to vector<4x8x8xf32>
    %55 = arith.subf %51, %54 : vector<4x8x8xf32>
    %56 = math.exp %55 : vector<4x8x8xf32>
    %cst_17 = arith.constant dense<0.000000e+00> : vector<4x8xf32>
    %57 = vector.multi_reduction <add>, %56, %cst_17 [2] : vector<4x8x8xf32> to vector<4x8xf32>
    %58 = vector.shape_cast %57 : vector<4x8xf32> to vector<4x8x1xf32>
    %59 = tpu.reciprocal %58 {approx = true} : vector<4x8x1xf32> -> vector<4x8x1xf32>
    %60 = vector.broadcast %59 : vector<4x8x1xf32> to vector<4x8x8xf32>
    %61 = arith.mulf %56, %60 : vector<4x8x8xf32>
    %62 = arith.truncf %61 : vector<4x8x8xf32> to vector<4x8x8xbf16>
    "tpu.trace_start"() <{level = 10 : i32, message = "hts,hsd->htd"}> : () -> ()
    %cst_18 = arith.constant dense<0.000000e+00> : vector<4x8x8xf32>
    %63 = tpu.matmul %62, %42, %cst_18 {dimension_numbers = #tpu.dot_dimension_numbers<[2], [1], [1], [2], [0, 0, 0, 1, 1, 2], [0], [0]>} : vector<4x8x8xbf16>, vector<4x8x8xbf16>, vector<4x8x8xf32> -> vector<4x8x8xf32>
    "tpu.trace_stop"() : () -> ()
    %64 = tpu.transpose %63, [1, 0, 2] : vector<4x8x8xf32> -> vector<8x4x8xf32>
    %65 = vector.shape_cast %64 : vector<8x4x8xf32> to vector<8x32xf32>
    %66 = arith.truncf %65 : vector<8x32xf32> to vector<8x32xbf16>
    %c0_19 = arith.constant 0 : index
    %c0_20 = arith.constant 0 : index
    %67 = vector.load %arg3[%c0_19, %c0_20] : memref<32x32xbf16, #tpu.memory_space<vmem>>, vector<32x32xbf16>
    %cst_21 = arith.constant dense<0.000000e+00> : vector<8x32xf32>
    %68 = tpu.matmul %66, %67, %cst_21 {dimension_numbers = #tpu.dot_dimension_numbers<[1], [0], [0], [1], [0, 0, 1, 1], [], []>} : vector<8x32xbf16>, vector<32x32xbf16>, vector<8x32xf32> -> vector<8x32xf32>
    %c0_22 = arith.constant 0 : index
    %c0_23 = arith.constant 0 : index
    %69 = vector.load %arg4[%c0_22, %c0_23] : memref<1x32xf32, #tpu.memory_space<vmem>>, vector<1x32xf32>
    %70 = vector.broadcast %69 : vector<1x32xf32> to vector<8x32xf32>
    %71 = arith.addf %68, %70 : vector<8x32xf32>
    %72 = arith.addf %1, %71 : vector<8x32xf32>
    %c0_24 = arith.constant 0 : index
    %c0_25 = arith.constant 0 : index
    %73 = vector.load %arg11[%c0_24, %c0_25] : memref<1x32xf32, #tpu.memory_space<vmem>>, vector<1x32xf32>
    %c0_26 = arith.constant 0 : index
    %c0_27 = arith.constant 0 : index
    %74 = vector.load %arg12[%c0_26, %c0_27] : memref<1x32xf32, #tpu.memory_space<vmem>>, vector<1x32xf32>
    %cst_28 = arith.constant dense<0.000000e+00> : vector<8xf32>
    %75 = vector.multi_reduction <add>, %72, %cst_28 [1] : vector<8x32xf32> to vector<8xf32>
    %76 = vector.shape_cast %75 : vector<8xf32> to vector<8x1xf32>
    %cst_29 = arith.constant 3.200000e+01 : f32
    %77 = vector.broadcast %cst_29 : f32 to vector<8x1xf32>
    %78 = arith.divf %76, %77 : vector<8x1xf32>
    %79 = vector.broadcast %78 : vector<8x1xf32> to vector<8x32xf32>
    %80 = arith.subf %72, %79 : vector<8x32xf32>
    %81 = arith.mulf %80, %80 : vector<8x32xf32>
    %cst_30 = arith.constant dense<0.000000e+00> : vector<8xf32>
    %82 = vector.multi_reduction <add>, %81, %cst_30 [1] : vector<8x32xf32> to vector<8xf32>
    %83 = vector.shape_cast %82 : vector<8xf32> to vector<8x1xf32>
    %cst_31 = arith.constant 3.200000e+01 : f32
    %84 = vector.broadcast %cst_31 : f32 to vector<8x1xf32>
    %85 = arith.divf %83, %84 : vector<8x1xf32>
    %86 = vector.broadcast %78 : vector<8x1xf32> to vector<8x32xf32>
    %87 = arith.subf %72, %86 : vector<8x32xf32>
    %cst_32 = arith.constant 9.99999974E-6 : f32
    %88 = vector.broadcast %cst_32 : f32 to vector<8x1xf32>
    %89 = arith.addf %85, %88 : vector<8x1xf32>
    %90 = math.rsqrt %89 : vector<8x1xf32>
    %91 = vector.broadcast %90 : vector<8x1xf32> to vector<8x32xf32>
    %92 = arith.mulf %87, %91 : vector<8x32xf32>
    %93 = vector.broadcast %73 : vector<1x32xf32> to vector<8x32xf32>
    %94 = arith.mulf %93, %92 : vector<8x32xf32>
    %95 = vector.broadcast %74 : vector<1x32xf32> to vector<8x32xf32>
    %96 = arith.addf %94, %95 : vector<8x32xf32>
    %97 = arith.truncf %96 : vector<8x32xf32> to vector<8x32xbf16>
    %c0_33 = arith.constant 0 : index
    %c0_34 = arith.constant 0 : index
    %98 = vector.load %arg5[%c0_33, %c0_34] : memref<32x128xbf16, #tpu.memory_space<vmem>>, vector<32x128xbf16>
    %cst_35 = arith.constant dense<0.000000e+00> : vector<8x128xf32>
    %99 = tpu.matmul %97, %98, %cst_35 {dimension_numbers = #tpu.dot_dimension_numbers<[1], [0], [0], [1], [0, 0, 1, 1], [], []>} : vector<8x32xbf16>, vector<32x128xbf16>, vector<8x128xf32> -> vector<8x128xf32>
    %c0_36 = arith.constant 0 : index
    %c0_37 = arith.constant 0 : index
    %100 = vector.load %arg6[%c0_36, %c0_37] : memref<1x128xf32, #tpu.memory_space<vmem>>, vector<1x128xf32>
    %101 = vector.broadcast %100 : vector<1x128xf32> to vector<8x128xf32>
    %102 = arith.addf %99, %101 : vector<8x128xf32>
    %cst_38 = arith.constant 5.000000e-01 : f32
    %103 = vector.broadcast %cst_38 : f32 to vector<8x128xf32>
    %104 = arith.mulf %103, %102 : vector<8x128xf32>
    %105 = arith.mulf %102, %102 : vector<8x128xf32>
    %106 = arith.mulf %102, %105 : vector<8x128xf32>
    %cst_39 = arith.constant 4.471500e-02 : f32
    %107 = vector.broadcast %cst_39 : f32 to vector<8x128xf32>
    %108 = arith.mulf %107, %106 : vector<8x128xf32>
    %109 = arith.addf %102, %108 : vector<8x128xf32>
    %cst_40 = arith.constant 0.797884583 : f32
    %110 = vector.broadcast %cst_40 : f32 to vector<8x128xf32>
    %111 = arith.mulf %110, %109 : vector<8x128xf32>
    %112 = math.tanh %111 : vector<8x128xf32>
    %cst_41 = arith.constant 1.000000e+00 : f32
    %113 = vector.broadcast %cst_41 : f32 to vector<8x128xf32>
    %114 = arith.addf %113, %112 : vector<8x128xf32>
    %115 = arith.mulf %104, %114 : vector<8x128xf32>
    %116 = arith.truncf %115 : vector<8x128xf32> to vector<8x128xbf16>
    %c0_42 = arith.constant 0 : index
    %c0_43 = arith.constant 0 : index
    %117 = vector.load %arg7[%c0_42, %c0_43] : memref<128x32xbf16, #tpu.memory_space<vmem>>, vector<128x32xbf16>
    %cst_44 = arith.constant dense<0.000000e+00> : vector<8x32xf32>
    %118 = tpu.matmul %116, %117, %cst_44 {dimension_numbers = #tpu.dot_dimension_numbers<[1], [0], [0], [1], [0, 0, 1, 1], [], []>} : vector<8x128xbf16>, vector<128x32xbf16>, vector<8x32xf32> -> vector<8x32xf32>
    %c0_45 = arith.constant 0 : index
    %c0_46 = arith.constant 0 : index
    %119 = vector.load %arg8[%c0_45, %c0_46] : memref<1x32xf32, #tpu.memory_space<vmem>>, vector<1x32xf32>
    %120 = vector.broadcast %119 : vector<1x32xf32> to vector<8x32xf32>
    %121 = arith.addf %118, %120 : vector<8x32xf32>
    %122 = arith.addf %72, %121 : vector<8x32xf32>
    %c0_47 = arith.constant 0 : index
    %c0_48 = arith.constant 0 : index
    %c0_49 = arith.constant 0 : index
    %123 = vector.load %arg13[%c0_47, %c0_48, %c0_49] : memref<1x8x32xf32, #tpu.memory_space<vmem>>, vector<1x8x32xf32>
    %124 = vector.shape_cast %123 : vector<1x8x32xf32> to vector<8x32xf32>
    %125 = vector.shape_cast %122 : vector<8x32xf32> to vector<1x8x32xf32>
    tpu.vector_store %arg13[%c0_47, %c0_48, %c0_49], %125 {strides = array<i32>} : memref<1x8x32xf32, #tpu.memory_space<vmem>>, vector<1x8x32xf32>,
    return
  }
  func.func @transform_0(%arg0: i32) -> (i32, i32, i32) {
    %c0_i32 = arith.constant 0 : i32
    %c0_i32_0 = arith.constant 0 : i32
    %c0_i32_1 = arith.constant 0 : i32
    return %arg0, %c0_i32, %c0_i32_0 : i32, i32, i32
  }
  func.func @transform_1(%arg0: i32) -> (i32, i32) {
    %c0_i32 = arith.constant 0 : i32
    %c0_i32_0 = arith.constant 0 : i32
    %c0_i32_1 = arith.constant 0 : i32
    return %c0_i32, %c0_i32_0 : i32, i32
  }
  func.func @transform_2(%arg0: i32) -> (i32, i32) {
    %c0_i32 = arith.constant 0 : i32
    %c0_i32_0 = arith.constant 0 : i32
    %c0_i32_1 = arith.constant 0 : i32
    return %c0_i32, %c0_i32_0 : i32, i32
  }
  func.func @transform_3(%arg0: i32) -> (i32, i32) {
    %c0_i32 = arith.constant 0 : i32
    %c0_i32_0 = arith.constant 0 : i32
    %c0_i32_1 = arith.constant 0 : i32
    return %c0_i32, %c0_i32_0 : i32, i32
  }
  func.func @transform_4(%arg0: i32) -> (i32, i32) {
    %c0_i32 = arith.constant 0 : i32
    %c0_i32_0 = arith.constant 0 : i32
    %c0_i32_1 = arith.constant 0 : i32
    return %c0_i32, %c0_i32_0 : i32, i32
  }
  func.func @transform_5(%arg0: i32) -> (i32, i32) {
    %c0_i32 = arith.constant 0 : i32
    %c0_i32_0 = arith.constant 0 : i32
    %c0_i32_1 = arith.constant 0 : i32
    return %c0_i32, %c0_i32_0 : i32, i32
  }
  func.func @transform_6(%arg0: i32) -> (i32, i32) {
    %c0_i32 = arith.constant 0 : i32
    %c0_i32_0 = arith.constant 0 : i32
    %c0_i32_1 = arith.constant 0 : i32
    return %c0_i32, %c0_i32_0 : i32, i32
  }
  func.func @transform_7(%arg0: i32) -> (i32, i32) {
    %c0_i32 = arith.constant 0 : i32
    %c0_i32_0 = arith.constant 0 : i32
    %c0_i32_1 = arith.constant 0 : i32
    return %c0_i32, %c0_i32_0 : i32, i32
  }
  func.func @transform_8(%arg0: i32) -> (i32, i32) {
    %c0_i32 = arith.constant 0 : i32
    %c0_i32_0 = arith.constant 0 : i32
    %c0_i32_1 = arith.constant 0 : i32
    return %c0_i32, %c0_i32_0 : i32, i32
  }
  func.func @transform_9(%arg0: i32) -> (i32, i32) {
    %c0_i32 = arith.constant 0 : i32
    %c0_i32_0 = arith.constant 0 : i32
    %c0_i32_1 = arith.constant 0 : i32
    return %c0_i32, %c0_i32_0 : i32, i32
  }
  func.func @transform_10(%arg0: i32) -> (i32, i32) {
    %c0_i32 = arith.constant 0 : i32
    %c0_i32_0 = arith.constant 0 : i32
    %c0_i32_1 = arith.constant 0 : i32
    return %c0_i32, %c0_i32_0 : i32, i32
  }
  func.func @transform_11(%arg0: i32) -> (i32, i32) {
    %c0_i32 = arith.constant 0 : i32
    %c0_i32_0 = arith.constant 0 : i32
    %c0_i32_1 = arith.constant 0 : i32
    return %c0_i32, %c0_i32_0 : i32, i32
  }
  func.func @transform_12(%arg0: i32) -> (i32, i32, i32) {
    %c0_i32 = arith.constant 0 : i32
    %c0_i32_0 = arith.constant 0 : i32
    %c0_i32_1 = arith.constant 0 : i32
    return %arg0, %c0_i32, %c0_i32_0 : i32, i32, i32
  }
}

</mosaic_0001>

<llo_original>
// kernel: tpu_custom_call.1
$region0: #{tpu_custom_call.1}
  #allocation0 [shape = 'u32[]', space=smem, size = 0x4, offset = 0x4, fixed_abs, tag = 'smem constant byte address 0x4 - core index']
  #allocation1 [shape = 'u32[72,128]{1,0:T(1,128)}', space=vmem, size = 0x9000, scoped, tag = 'internal scratch']
  %s0 = inlined_call_operand.vmem [shape: f32[2,8,32], index: 0, kind: input, shape index: {}]
  %s1 = inlined_call_operand.vmem [shape: bf16[32,96], index: 1, kind: input, shape index: {}]
  %s2 = inlined_call_operand.vmem [shape: bf16[32,32], index: 2, kind: input, shape index: {}]
  %s3 = inlined_call_operand.vmem [shape: f32[1,32], index: 3, kind: input, shape index: {}]
  %s4 = inlined_call_operand.vmem [shape: bf16[32,128], index: 4, kind: input, shape index: {}]
  %s5 = inlined_call_operand.vmem [shape: f32[1,128], index: 5, kind: input, shape index: {}]
  %s6 = inlined_call_operand.vmem [shape: bf16[128,32], index: 6, kind: input, shape index: {}]
  %s7 = inlined_call_operand.vmem [shape: f32[1,32], index: 7, kind: input, shape index: {}]
  %s8 = inlined_call_operand.vmem [shape: f32[1,32], index: 8, kind: input, shape index: {}]
  %s9 = inlined_call_operand.vmem [shape: f32[1,32], index: 9, kind: input, shape index: {}]
  %s10 = inlined_call_operand.vmem [shape: f32[1,32], index: 10, kind: input, shape index: {}]
  %s11 = inlined_call_operand.vmem [shape: f32[1,32], index: 11, kind: input, shape index: {}]
  %s12 = inlined_call_operand.hbm [shape: f32[2,8,32], index: 12, kind: output, shape index: {}]
  %s13 = sld [smem:[#allocation0]]
  $region81: #{tpu_custom_call.1} parent=0
    _
  %s15 = ssub.s32 1, %s13
  %s16 = scalar_select 0, %s15, %s13
  $region1: #{tpu_custom_call.1} parent=0
    #allocation2 [shape = 'u8[8192]{0}', space=vmem, size = 0x2000, scoped, tag = 'output window, operand 0']
    #allocation3 [shape = 's32[2]{0}', space=sflag, size = 0x8, scoped, tag = 'scoped memory for tpu_custom_call.1']
    %17 = vsyncpa [#allocation3], 0
    %s18 = scalar_lea.sflag [#allocation3], 1
    %19 = vsyncpa %s18, 0
    loop: start=0, step=1, limit=4
    $region2: #{tpu_custom_call.1} parent=1 // loop_pre_header
      _
    $region3: #{tpu_custom_call.1} parent=1 // loop_header
      %s21 = sphi 0, %s25
      %p22 = scmp.ge.s32.totalorder %s21, 4
      %s31 = sphi 0, %s33
      %s34 = sphi 0, %s31
      %s35 = sphi 0, %s34
      %s51 = sphi 0, %s35
      %s55 = sphi 0, %s55
      %s57 = sphi 0, %s55
      %s58 = sphi 0, %s57
      %s72 = sphi 0, %s58
      %s76 = sphi 0, %s76
      %s78 = sphi 0, %s76
      %s79 = sphi 0, %s78
      %s93 = sphi 0, %s79
      %s97 = sphi 0, %s97
      %s99 = sphi 0, %s97
      %s100 = sphi 0, %s99
      %s114 = sphi 0, %s100
      %s118 = sphi 0, %s118
      %s120 = sphi 0, %s118
      %s121 = sphi 0, %s120
      %s135 = sphi 0, %s121
      %s139 = sphi 0, %s139
      %s141 = sphi 0, %s139
      %s142 = sphi 0, %s141
      %s156 = sphi 0, %s142
      %s160 = sphi 0, %s160
      %s162 = sphi 0, %s160
      %s163 = sphi 0, %s162
      %s177 = sphi 0, %s163
      %s181 = sphi 0, %s181
      %s183 = sphi 0, %s181
      %s184 = sphi 0, %s183
      %s198 = sphi 0, %s184
      %s202 = sphi 0, %s202
      %s204 = sphi 0, %s202
      %s205 = sphi 0, %s204
      %s219 = sphi 0, %s205
      %s223 = sphi 0, %s223
      %s225 = sphi 0, %s223
      %s226 = sphi 0, %s225
      %s240 = sphi 0, %s226
      %s244 = sphi 0, %s244
      %s246 = sphi 0, %s244
      %s247 = sphi 0, %s246
      %s261 = sphi 0, %s247
      %s265 = sphi 0, %s265
      %s267 = sphi 0, %s265
      %s268 = sphi 0, %s267
      %s282 = sphi 0, %s268
      %s288 = sphi 0, %s290
      %s291 = sphi 0, %s288
      %s292 = sphi 0, %s291
      %s308 = sphi 0, %s292
    $region4: #{tpu_custom_call.1} parent=1 // loop_header_branch
      %24 = sbr.rel (%p22) target = $region8
    $region5: #{tpu_custom_call.1} parent=1 // loop_body
      %s26 = ssub.s32 %s21, 1
      %s27 = ssub.s32 %s21, 2
      %s28 = sadd.s32 %s21, 1
      %s29 = ssub.s32 %s21, %s28
      %p30 = scmp.eq.s32.totalorder %s29, 0
      %s32 = sadd.s32 %s31, 1
      %s33 = scalar_select %p30, %s31, %s32
      %p36 = pneg %p30
      %p37 = scmp.eq.s32.totalorder %s21, 1
      %p38 = por %p36, %p37
      %p39 = scmp.ne.s32.totalorder %s31, %s34
      %p40 = scmp.eq.s32.totalorder %s21, 0
      %p41 = por %p39, %p40
      %p42 = scmp.ne.s32.totalorder %s31, %s34
      %p43 = scmp.eq.s32.totalorder %s26, 1
      %p44 = por %p42, %p43
      %p45 = scmp.ne.s32.totalorder %s34, %s35
      %p46 = scmp.eq.s32.totalorder %s26, 0
      %p47 = por %p45, %p46
      %p48 = scmp.ne.s32.totalorder %s34, %s35
      %p49 = scmp.eq.s32.totalorder %s27, 1
      %p50 = por %p48, %p49
      %p52 = scmp.ne.s32.totalorder %s35, %s51
      %p53 = scmp.eq.s32.totalorder %s27, 0
      %p54 = por %p52, %p53
      %s56 = sadd.s32 %s55, 1
      %p59 = scmp.eq.s32.totalorder %s21, 1
      %p60 = scmp.ne.s32.totalorder %s55, %s57
      %p61 = scmp.eq.s32.totalorder %s21, 0
      %p62 = por %p60, %p61
      %p63 = scmp.ne.s32.totalorder %s55, %s57
      %p64 = scmp.eq.s32.totalorder %s26, 1
      %p65 = por %p63, %p64
      %p66 = scmp.ne.s32.totalorder %s57, %s58
      %p67 = scmp.eq.s32.totalorder %s26, 0
      %p68 = por %p66, %p67
      %p69 = scmp.ne.s32.totalorder %s57, %s58
      %p70 = scmp.eq.s32.totalorder %s27, 1
      %p71 = por %p69, %p70
      %p73 = scmp.ne.s32.totalorder %s58, %s72
      %p74 = scmp.eq.s32.totalorder %s27, 0
      %p75 = por %p73, %p74
      %s77 = sadd.s32 %s76, 1
      %p80 = scmp.eq.s32.totalorder %s21, 1
      %p81 = scmp.ne.s32.totalorder %s76, %s78
      %p82 = scmp.eq.s32.totalorder %s21, 0
      %p83 = por %p81, %p82
      %p84 = scmp.ne.s32.totalorder %s76, %s78
      %p85 = scmp.eq.s32.totalorder %s26, 1
      %p86 = por %p84, %p85
      %p87 = scmp.ne.s32.totalorder %s78, %s79
      %p88 = scmp.eq.s32.totalorder %s26, 0
      %p89 = por %p87, %p88
      %p90 = scmp.ne.s32.totalorder %s78, %s79
      %p91 = scmp.eq.s32.totalorder %s27, 1
      %p92 = por %p90, %p91
      %p94 = scmp.ne.s32.totalorder %s79, %s93
      %p95 = scmp.eq.s32.totalorder %s27, 0
      %p96 = por %p94, %p95
      %s98 = sadd.s32 %s97, 1
      %p101 = scmp.eq.s32.totalorder %s21, 1
      %p102 = scmp.ne.s32.totalorder %s97, %s99
      %p103 = scmp.eq.s32.totalorder %s21, 0
      %p104 = por %p102, %p103
      %p105 = scmp.ne.s32.totalorder %s97, %s99
      %p106 = scmp.eq.s32.totalorder %s26, 1
      %p107 = por %p105, %p106
      %p108 = scmp.ne.s32.totalorder %s99, %s100
      %p109 = scmp.eq.s32.totalorder %s26, 0
      %p110 = por %p108, %p109
      %p111 = scmp.ne.s32.totalorder %s99, %s100
      %p112 = scmp.eq.s32.totalorder %s27, 1
      %p113 = por %p111, %p112
      %p115 = scmp.ne.s32.totalorder %s100, %s114
      %p116 = scmp.eq.s32.totalorder %s27, 0
      %p117 = por %p115, %p116
      %s119 = sadd.s32 %s118, 1
      %p122 = scmp.eq.s32.totalorder %s21, 1
      %p123 = scmp.ne.s32.totalorder %s118, %s120
      %p124 = scmp.eq.s32.totalorder %s21, 0
      %p125 = por %p123, %p124
      %p126 = scmp.ne.s32.totalorder %s118, %s120
      %p127 = scmp.eq.s32.totalorder %s26, 1
      %p128 = por %p126, %p127
      %p129 = scmp.ne.s32.totalorder %s120, %s121
      %p130 = scmp.eq.s32.totalorder %s26, 0
      %p131 = por %p129, %p130
      %p132 = scmp.ne.s32.totalorder %s120, %s121
      %p133 = scmp.eq.s32.totalorder %s27, 1
      %p134 = por %p132, %p133
      %p136 = scmp.ne.s32.totalorder %s121, %s135
      %p137 = scmp.eq.s32.totalorder %s27, 0
      %p138 = por %p136, %p137
      %s140 = sadd.s32 %s139, 1
      %p143 = scmp.eq.s32.totalorder %s21, 1
      %p144 = scmp.ne.s32.totalorder %s139, %s141
      %p145 = scmp.eq.s32.totalorder %s21, 0
      %p146 = por %p144, %p145
      %p147 = scmp.ne.s32.totalorder %s139, %s141
      %p148 = scmp.eq.s32.totalorder %s26, 1
      %p149 = por %p147, %p148
      %p150 = scmp.ne.s32.totalorder %s141, %s142
      %p151 = scmp.eq.s32.totalorder %s26, 0
      %p152 = por %p150, %p151
      %p153 = scmp.ne.s32.totalorder %s141, %s142
      %p154 = scmp.eq.s32.totalorder %s27, 1
      %p155 = por %p153, %p154
      %p157 = scmp.ne.s32.totalorder %s142, %s156
      %p158 = scmp.eq.s32.totalorder %s27, 0
      %p159 = por %p157, %p158
      %s161 = sadd.s32 %s160, 1
      %p164 = scmp.eq.s32.totalorder %s21, 1
      %p165 = scmp.ne.s32.totalorder %s160, %s162
      %p166 = scmp.eq.s32.totalorder %s21, 0
      %p167 = por %p165, %p166
      %p168 = scmp.ne.s32.totalorder %s160, %s162
      %p169 = scmp.eq.s32.totalorder %s26, 1
      %p170 = por %p168, %p169
      %p171 = scmp.ne.s32.totalorder %s162, %s163
      %p172 = scmp.eq.s32.totalorder %s26, 0
      %p173 = por %p171, %p172
      %p174 = scmp.ne.s32.totalorder %s162, %s163
      %p175 = scmp.eq.s32.totalorder %s27, 1
      %p176 = por %p174, %p175
      %p178 = scmp.ne.s32.totalorder %s163, %s177
      %p179 = scmp.eq.s32.totalorder %s27, 0
      %p180 = por %p178, %p179
      %s182 = sadd.s32 %s181, 1
      %p185 = scmp.eq.s32.totalorder %s21, 1
      %p186 = scmp.ne.s32.totalorder %s181, %s183
      %p187 = scmp.eq.s32.totalorder %s21, 0
      %p188 = por %p186, %p187
      %p189 = scmp.ne.s32.totalorder %s181, %s183
      %p190 = scmp.eq.s32.totalorder %s26, 1
      %p191 = por %p189, %p190
      %p192 = scmp.ne.s32.totalorder %s183, %s184
      %p193 = scmp.eq.s32.totalorder %s26, 0
      %p194 = por %p192, %p193
      %p195 = scmp.ne.s32.totalorder %s183, %s184
      %p196 = scmp.eq.s32.totalorder %s27, 1
      %p197 = por %p195, %p196
      %p199 = scmp.ne.s32.totalorder %s184, %s198
      %p200 = scmp.eq.s32.totalorder %s27, 0
      %p201 = por %p199, %p200
      %s203 = sadd.s32 %s202, 1
      %p206 = scmp.eq.s32.totalorder %s21, 1
      %p207 = scmp.ne.s32.totalorder %s202, %s204
      %p208 = scmp.eq.s32.totalorder %s21, 0
      %p209 = por %p207, %p208
      %p210 = scmp.ne.s32.totalorder %s202, %s204
      %p211 = scmp.eq.s32.totalorder %s26, 1
      %p212 = por %p210, %p211
      %p213 = scmp.ne.s32.totalorder %s204, %s205
      %p214 = scmp.eq.s32.totalorder %s26, 0
      %p215 = por %p213, %p214
      %p216 = scmp.ne.s32.totalorder %s204, %s205
      %p217 = scmp.eq.s32.totalorder %s27, 1
      %p218 = por %p216, %p217
      %p220 = scmp.ne.s32.totalorder %s205, %s219
      %p221 = scmp.eq.s32.totalorder %s27, 0
      %p222 = por %p220, %p221
      %s224 = sadd.s32 %s223, 1
      %p227 = scmp.eq.s32.totalorder %s21, 1
      %p228 = scmp.ne.s32.totalorder %s223, %s225
      %p229 = scmp.eq.s32.totalorder %s21, 0
      %p230 = por %p228, %p229
      %p231 = scmp.ne.s32.totalorder %s223, %s225
      %p232 = scmp.eq.s32.totalorder %s26, 1
      %p233 = por %p231, %p232
      %p234 = scmp.ne.s32.totalorder %s225, %s226
      %p235 = scmp.eq.s32.totalorder %s26, 0
      %p236 = por %p234, %p235
      %p237 = scmp.ne.s32.totalorder %s225, %s226
      %p238 = scmp.eq.s32.totalorder %s27, 1
      %p239 = por %p237, %p238
      %p241 = scmp.ne.s32.totalorder %s226, %s240
      %p242 = scmp.eq.s32.totalorder %s27, 0
      %p243 = por %p241, %p242
      %s245 = sadd.s32 %s244, 1
      %p248 = scmp.eq.s32.totalorder %s21, 1
      %p249 = scmp.ne.s32.totalorder %s244, %s246
      %p250 = scmp.eq.s32.totalorder %s21, 0
      %p251 = por %p249, %p250
      %p252 = scmp.ne.s32.totalorder %s244, %s246
      %p253 = scmp.eq.s32.totalorder %s26, 1
      %p254 = por %p252, %p253
      %p255 = scmp.ne.s32.totalorder %s246, %s247
      %p256 = scmp.eq.s32.totalorder %s26, 0
      %p257 = por %p255, %p256
      %p258 = scmp.ne.s32.totalorder %s246, %s247
      %p259 = scmp.eq.s32.totalorder %s27, 1
      %p260 = por %p258, %p259
      %p262 = scmp.ne.s32.totalorder %s247, %s261
      %p263 = scmp.eq.s32.totalorder %s27, 0
      %p264 = por %p262, %p263
      %s266 = sadd.s32 %s265, 1
      %p269 = scmp.eq.s32.totalorder %s21, 1
      %p270 = scmp.ne.s32.totalorder %s265, %s267
      %p271 = scmp.eq.s32.totalorder %s21, 0
      %p272 = por %p270, %p271
      %p273 = scmp.ne.s32.totalorder %s265, %s267
      %p274 = scmp.eq.s32.totalorder %s26, 1
      %p275 = por %p273, %p274
      %p276 = scmp.ne.s32.totalorder %s267, %s268
      %p277 = scmp.eq.s32.totalorder %s26, 0
      %p278 = por %p276, %p277
      %p279 = scmp.ne.s32.totalorder %s267, %s268
      %p280 = scmp.eq.s32.totalorder %s27, 1
      %p281 = por %p279, %p280
      %p283 = scmp.ne.s32.totalorder %s268, %s282
      %p284 = scmp.eq.s32.totalorder %s27, 0
      %p285 = por %p283, %p284
      %s286 = ssub.s32 %s21, %s28
      %p287 = scmp.eq.s32.totalorder %s286, 0
      %s289 = sadd.s32 %s288, 1
      %s290 = scalar_select %p287, %s288, %s289
      %p293 = pneg %p287
      %p294 = scmp.eq.s32.totalorder %s21, 1
      %p295 = por %p293, %p294
      %p296 = scmp.ne.s32.totalorder %s288, %s291
      %p297 = scmp.eq.s32.totalorder %s21, 0
      %p298 = por %p296, %p297
      %p299 = scmp.ne.s32.totalorder %s288, %s291
      %p300 = scmp.eq.s32.totalorder %s26, 1
      %p301 = por %p299, %p300
      %p302 = scmp.ne.s32.totalorder %s291, %s292
      %p303 = scmp.eq.s32.totalorder %s26, 0
      %p304 = por %p302, %p303
      %p305 = scmp.ne.s32.totalorder %s291, %s292
      %p306 = scmp.eq.s32.totalorder %s27, 1
      %p307 = por %p305, %p306
      %p309 = scmp.ne.s32.totalorder %s292, %s308
      %p310 = scmp.eq.s32.totalorder %s27, 0
      %p311 = por %p309, %p310
      %p312 = scmp.le.s32.totalorder 1, %s21
      %p313 = scmp.lt.s32.totalorder %s21, 3
      %p314 = pnand %p312, %p313
      %p315 = pneg %p314
      // Predicated region
      $region9: #{tpu_custom_call.1} parent=5 // pred_check
        _
      $region10: #{tpu_custom_call.1} parent=5 // pred_check_branch
        %317 = sbr.rel (%p314) target = $region12
      $region11: #{tpu_custom_call.1} parent=5 // pred_region
        %s318 = ssub.s32 %s21, 1
        // Predicated region
        $region13: #{tpu_custom_call.1} parent=11 // pred_check
          %p319 = pneg %p68
        $region14: #{tpu_custom_call.1} parent=11 // pred_check_branch
          %321 = sbr.rel (%p319) target = $region16
        $region15: #{tpu_custom_call.1} parent=11 // pred_region
          _
        $region16: #{tpu_custom_call.1} parent=11 // pred_fallthru
          _
        // Predicated region
        $region17: #{tpu_custom_call.1} parent=11 // pred_check
          %p322 = pneg %p89
        $region18: #{tpu_custom_call.1} parent=11 // pred_check_branch
          %324 = sbr.rel (%p322) target = $region20
        $region19: #{tpu_custom_call.1} parent=11 // pred_region
          _
        $region20: #{tpu_custom_call.1} parent=11 // pred_fallthru
          _
        // Predicated region
        $region21: #{tpu_custom_call.1} parent=11 // pred_check
          %p325 = pneg %p110
        $region22: #{tpu_custom_call.1} parent=11 // pred_check_branch
          %327 = sbr.rel (%p325) target = $region24
        $region23: #{tpu_custom_call.1} parent=11 // pred_region
          _
        $region24: #{tpu_custom_call.1} parent=11 // pred_fallthru
          _
        // Predicated region
        $region25: #{tpu_custom_call.1} parent=11 // pred_check
          %p328 = pneg %p131
        $region26: #{tpu_custom_call.1} parent=11 // pred_check_branch
          %330 = sbr.rel (%p328) target = $region28
        $region27: #{tpu_custom_call.1} parent=11 // pred_region
          _
        $region28: #{tpu_custom_call.1} parent=11 // pred_fallthru
          _
        // Predicated region
        $region29: #{tpu_custom_call.1} parent=11 // pred_check
          %p331 = pneg %p152
        $region30: #{tpu_custom_call.1} parent=11 // pred_check_branch
          %333 = sbr.rel (%p331) target = $region32
        $region31: #{tpu_custom_call.1} parent=11 // pred_region
          _
        $region32: #{tpu_custom_call.1} parent=11 // pred_fallthru
          _
        // Predicated region
        $region33: #{tpu_custom_call.1} parent=11 // pred_check
          %p334 = pneg %p173
        $region34: #{tpu_custom_call.1} parent=11 // pred_check_branch
          %336 = sbr.rel (%p334) target = $region36
        $region35: #{tpu_custom_call.1} parent=11 // pred_region
          _
        $region36: #{tpu_custom_call.1} parent=11 // pred_fallthru
          _
        // Predicated region
        $region37: #{tpu_custom_call.1} parent=11 // pred_check
          %p337 = pneg %p194
        $region38: #{tpu_custom_call.1} parent=11 // pred_check_branch
          %339 = sbr.rel (%p337) target = $region40
        $region39: #{tpu_custom_call.1} parent=11 // pred_region
          _
        $region40: #{tpu_custom_call.1} parent=11 // pred_fallthru
          _
        // Predicated region
        $region41: #{tpu_custom_call.1} parent=11 // pred_check
          %p340 = pneg %p215
        $region42: #{tpu_custom_call.1} parent=11 // pred_check_branch
          %342 = sbr.rel (%p340) target = $region44
        $region43: #{tpu_custom_call.1} parent=11 // pred_region
          _
        $region44: #{tpu_custom_call.1} parent=11 // pred_fallthru
          _
        // Predicated region
        $region45: #{tpu_custom_call.1} parent=11 // pred_check
          %p343 = pneg %p236
        $region46: #{tpu_custom_call.1} parent=11 // pred_check_branch
          %345 = sbr.rel (%p343) target = $region48
        $region47: #{tpu_custom_call.1} parent=11 // pred_region
          _
        $region48: #{tpu_custom_call.1} parent=11 // pred_fallthru
          _
        // Predicated region
        $region49: #{tpu_custom_call.1} parent=11 // pred_check
          %p346 = pneg %p257
        $region50: #{tpu_custom_call.1} parent=11 // pred_check_branch
          %348 = sbr.rel (%p346) target = $region52
        $region51: #{tpu_custom_call.1} parent=11 // pred_region
          _
        $region52: #{tpu_custom_call.1} parent=11 // pred_fallthru
          _
        // Predicated region
        $region53: #{tpu_custom_call.1} parent=11 // pred_check
          %p349 = pneg %p278
        $region54: #{tpu_custom_call.1} parent=11 // pred_check_branch
          %351 = sbr.rel (%p349) target = $region56
        $region55: #{tpu_custom_call.1} parent=11 // pred_region
          _
        $region56: #{tpu_custom_call.1} parent=11 // pred_fallthru
          _
      $region12: #{tpu_custom_call.1} parent=5 // pred_fallthru
        _
      %p352 = scmp.lt.s32.totalorder %s21, 2
      // Predicated region
      $region57: #{tpu_custom_call.1} parent=5 // pred_check
        %p353 = pneg %p352
      $region58: #{tpu_custom_call.1} parent=5 // pred_check_branch
        %355 = sbr.rel (%p353) target = $region60
      $region59: #{tpu_custom_call.1} parent=5 // pred_region
        // Predicated region
        $region61: #{tpu_custom_call.1} parent=59 // pred_check
          %p356 = pneg %p41
        $region62: #{tpu_custom_call.1} parent=59 // pred_check_branch
          %358 = sbr.rel (%p356) target = $region64
        $region63: #{tpu_custom_call.1} parent=59 // pred_region
          %p359 = scmp.lt.s32.totalorder %s21, 1
          %s360 = scalar_select %p359, %s21, 1
          %s361 = smul.addr %s360, 8
          %s362 = scalar_lea.vmem %s0, %s361
        $region64: #{tpu_custom_call.1} parent=59 // pred_fallthru
          _
      $region60: #{tpu_custom_call.1} parent=5 // pred_fallthru
        _
      %p363 = scmp.le.s32.totalorder 1, %s21
      %p364 = scmp.lt.s32.totalorder %s21, 3
      %p365 = pnand %p363, %p364
      %p366 = pneg %p365
      // Predicated region
      $region65: #{tpu_custom_call.1} parent=5 // pred_check
        _
      $region66: #{tpu_custom_call.1} parent=5 // pred_check_branch
        %368 = sbr.rel (%p365) target = $region68
      $region67: #{tpu_custom_call.1} parent=5 // pred_region
        %s369 = ssub.s32 %s21, 1
        %p370 = scmp.lt.s32.totalorder %s26, 1
        %s371 = scalar_select %p370, %s26, 1
        %s372 = smul.addr %s371, 8
        %s373 = scalar_lea.vmem %s0, %s372
        %p374 = pneg %p47
        %p375 = pneg %p44
        %p376 = pneg %p68
        %p377 = pneg %p65
        %p378 = pneg %p89
        %p379 = pneg %p86
        %p380 = pneg %p110
        %p381 = pneg %p107
        %p382 = pneg %p131
        %p383 = pneg %p128
        %p384 = pneg %p152
        %p385 = pneg %p149
        %p386 = pneg %p173
        %p387 = pneg %p170
        %p388 = pneg %p194
        %p389 = pneg %p191
        %p390 = pneg %p215
        %p391 = pneg %p212
        %p392 = pneg %p236
        %p393 = pneg %p233
        %p394 = pneg %p257
        %p395 = pneg %p254
        %p396 = pneg %p278
        %p397 = pneg %p275
        %p398 = pneg %p304
        %p399 = pneg %p301
        %s400 = sand.u32 %s291, 1
        %s401 = scalar_lea.sflag [#allocation3], %s400
        %s402 = sand.u32 %s291, 1
        %s403 = smul.addr %s402, 8
        %s404 = scalar_lea.vmem [#allocation2], %s403
        %p405 = scmp.lt.s32.totalorder %s26, 1
        %s406 = scalar_select %p405, %s26, 1
        %s407 = smul.addr %s406, 8
        %s408 = scalar_lea.vmem %s0, %s407
        %v410 = vld [vmem:[%s408] sm:$0xff]
        %v411 = vld [vmem:[%s8] sm:$0x1]
        %v412 = vld [vmem:[%s9] sm:$0x1]
        %vm413 = vcmask 261120
        %v414 = vsel %vm413, %v410, 0.0
        %415 = vadd.xlane.f32.xlu0 %v414
        %v416 = vpop.xlane.xlu0 %415
        %v417 = vrcp.pop 32.0
        %v418 = vmul.f32 32.0, %v417
        %v419 = vsub.f32 1.0, %v418
        %v420 = vmul.f32 %v417, %v419
        %v421 = vadd.f32 %v417, %v420
        %vm422 = vweird.f32 %v417
        %v423 = vsel %vm422, %v417, %v421
        %v424 = vmul.f32 %v416, %v423
        %v425 = vsub.f32 %v410, %v424
        %v426 = vmul.f32 %v425, %v425
        %v427 = vsel %vm413, %v426, 0.0
        %428 = vadd.xlane.f32.xlu0 %v427
        %v429 = vpop.xlane.xlu0 %428
        %v430 = vmul.f32 %v429, %v423
        %v431 = vadd.f32 %v430, 1e-05
        %v432 = vrsqrt.pop %v431
        %v433 = vmul.f32 %v432, %v431
        %v434 = vmul.f32 %v433, %v432
        %v435 = vmul.f32 0.5, %v434
        %v436 = vsub.f32 1.5, %v435
        %v437 = vmul.f32 %v432, %v436
        %vm438 = vweird.f32 %v431
        %vm439 = vweird.f32 %v432
        %vm440 = vmor %vm438, %vm439
        %v441 = vsel %vm440, %v432, %v437
        %v442 = vmul.f32 %v425, %v441
        %v444 = vperm.slane %v411, 0
        %v446 = vmul.f32 %v444, %v442
        %v448 = vperm.slane %v412, 0
        %v450 = vadd.f32 %v446, %v448
        %v451 = vpack.c.bf16 %v450, %v450
        %v452 = vld [vmem:[%s1] sm:$0xf]
        %v453 = vld [vmem:[%s1 + $0x4] sm:$0xf]
        %v454 = vld [vmem:[%s1 + $0x8] sm:$0xf]
        %v455 = vld [vmem:[%s1 + $0xc] sm:$0xf]
        %v460 = vunpack.c.l.b16 %v452
        %v461 = vunpack.c.l.b16 %v453
        %v462 = vunpack.c.l.b16 %v454
        %v463 = vunpack.c.l.b16 %v455
        %v464 = vpack.c.b16 %v461, %v460
        %v465 = vpack.c.b16 %v463, %v462
        %v469 = vsel %vm413, %v451, 0
        %471 = vmatpush.bf16.msra.mxu0 0
        %472 = vmatpush.bf16.msra.mxu0 0
        %473 = vmatpush.bf16.msra.mxu0 0
        %474 = vmatpush.bf16.msra.mxu0 0
        %475 = vmatpush.bf16.msra.mxu0 0
        %476 = vmatpush.bf16.msra.mxu0 0
        %477 = vmatpush.bf16.msra.mxu0 %v465
        %478 = vmatpush.bf16.msra.mxu0 %v464
        %479 = vmatmul.bf16.gmra.mxu0 %v469
        %v480 = vpop.f32.mrf.mxu0
        %v481 = vadd.f32 0.0, %v480
        %v482 = vpop.f32.mrf.mxu0
        %483 = vdwg.mxu0
        %v484 = vmul.f32 %v481, 0.35355338
        %486 = vrot.lane.b32.xlu0 %v484, 120
        %v487 = vpop.permute.xlu0 %486
        %489 = vrot.lane.b32.xlu0 %v484, 112
        %v490 = vpop.permute.xlu0 %489
        %492 = vrot.lane.b32.xlu0 %v484, 104
        %v493 = vpop.permute.xlu0 %492
        %v495 = vrot.slane %v490, 4
        %vm496 = vcmask 1047556
        %v497 = vsel %vm496, %v495, %v484
        %v498 = vrot.slane %v484, 4
        %v499 = vsel %vm496, %v490, %v498
        %v501 = vunpack.c.l.s4 1983009808
        %v502 = vunpack.c.0.s8 %v501
        %v503 = vperm.slane %v497, %v502
        %v505 = vunpack.c.l.s4 1983009808
        %v506 = vunpack.c.0.s8 %v505
        %v507 = vperm.slane %v499, %v506
        %v508 = vrot.slane %v493, 4
        %v509 = vsel %vm496, %v508, %v487
        %v510 = vrot.slane %v487, 4
        %v511 = vsel %vm496, %v493, %v510
        %v513 = vunpack.c.l.s4 1983009808
        %v514 = vunpack.c.0.s8 %v513
        %v515 = vperm.slane %v509, %v514
        %v517 = vunpack.c.l.s4 1983009808
        %v518 = vunpack.c.0.s8 %v517
        %v519 = vperm.slane %v511, %v518
        %v520 = vrot.slane %v515, 4
        %v521 = vsel %vm496, %v520, %v503
        %v522 = vrot.slane %v503, 4
        %v523 = vsel %vm496, %v515, %v522
        %v525 = vunpack.c.l.s4 1934713408
        %v526 = vunpack.c.0.s8 %v525
        %v527 = vperm.slane %v521, %v526
        %v529 = vunpack.c.l.s4 1934713408
        %v530 = vunpack.c.0.s8 %v529
        %v531 = vperm.slane %v523, %v530
        %v532 = vrot.slane %v519, 4
        %v533 = vsel %vm496, %v532, %v507
        %v534 = vrot.slane %v507, 4
        %v535 = vsel %vm496, %v519, %v534
        %v537 = vunpack.c.l.s4 1934713408
        %v538 = vunpack.c.0.s8 %v537
        %v539 = vperm.slane %v533, %v538
        %v541 = vunpack.c.l.s4 1934713408
        %v542 = vunpack.c.0.s8 %v541
        %v543 = vperm.slane %v535, %v542
        %v544 = vrot.slane %v527, 4
        %v545 = vsel %vm496, 0.0, %v544
        %v546 = vrot.slane %v531, 4
        %v547 = vsel %vm496, 0.0, %v546
        %v548 = vrot.slane %v539, 4
        %v549 = vsel %vm496, 0.0, %v548
        %v550 = vrot.slane %v543, 4
        %v551 = vsel %vm496, 0.0, %v550
        %v552 = vsel %vm496, %v546, %v527
        %v554 = vunpack.c.l.s4 1983009808
        %v555 = vunpack.c.0.s8 %v554
        %v556 = vperm.slane %v552, %v555
        %v557 = vrot.slane %v547, 4
        %v558 = vsel %vm496, %v557, %v545
        %v560 = vunpack.c.l.s4 1983009808
        %v561 = vunpack.c.0.s8 %v560
        %v562 = vperm.slane %v558, %v561
        %v563 = vsel %vm496, %v550, %v539
        %v565 = vunpack.c.l.s4 1983009808
        %v566 = vunpack.c.0.s8 %v565
        %v567 = vperm.slane %v563, %v566
        %v568 = vrot.slane %v551, 4
        %v569 = vsel %vm496, %v568, %v549
        %v571 = vunpack.c.l.s4 1983009808
        %v572 = vunpack.c.0.s8 %v571
        %v573 = vperm.slane %v569, %v572
        %v574 = vrot.slane %v562, 4
        %v575 = vsel %vm496, %v574, %v556
        %v576 = vrot.slane %v556, 4
        %v577 = vsel %vm496, %v562, %v576
        %v579 = vunpack.c.l.s4 1934713408
        %v580 = vunpack.c.0.s8 %v579
        %v581 = vperm.slane %v575, %v580
        %v583 = vunpack.c.l.s4 1934713408
        %v584 = vunpack.c.0.s8 %v583
        %v585 = vperm.slane %v577, %v584
        %v586 = vrot.slane %v573, 4
        %v587 = vsel %vm496, %v586, %v567
        %v588 = vrot.slane %v567, 4
        %v589 = vsel %vm496, %v573, %v588
        %v591 = vunpack.c.l.s4 1934713408
        %v592 = vunpack.c.0.s8 %v591
        %v593 = vperm.slane %v587, %v592
        %v595 = vunpack.c.l.s4 1934713408
        %v596 = vunpack.c.0.s8 %v595
        %v597 = vperm.slane %v589, %v596
        %v598 = vrot.slane %v593, 4
        %v599 = vsel %vm496, %v598, %v581
        %v600 = vrot.slane %v581, 4
        %v601 = vsel %vm496, %v593, %v600
        %v602 = vrot.slane %v597, 4
        %v603 = vsel %vm496, %v602, %v585
        %v604 = vrot.slane %v585, 4
        %v605 = vsel %vm496, %v597, %v604
        %v606 = vpack.c.bf16 %v599, %v599
        %v607 = vpack.c.bf16 %v601, %v601
        %v608 = vpack.c.bf16 %v603, %v603
        %v609 = vpack.c.bf16 %v605, %v605
        %611 = vrot.lane.b32.xlu0 %v481, 120
        %v612 = vpop.permute.xlu0 %611
        %613 = vrot.lane.b32.xlu0 %v481, 112
        %v614 = vpop.permute.xlu0 %613
        %615 = vrot.lane.b32.xlu0 %v481, 104
        %v616 = vpop.permute.xlu0 %615
        %617 = vrot.lane.b32.xlu0 %v481, 96
        %v618 = vpop.permute.xlu0 %617
        %619 = vrot.lane.b32.xlu0 %v612, 96
        %v620 = vpop.permute.xlu0 %619
        %621 = vrot.lane.b32.xlu0 %v614, 96
        %v622 = vpop.permute.xlu0 %621
        %623 = vrot.lane.b32.xlu0 %v616, 96
        %v624 = vpop.permute.xlu0 %623
        %v629 = vrot.slane %v622, 4
        %v630 = vsel %vm496, %v629, %v618
        %v631 = vrot.slane %v618, 4
        %v632 = vsel %vm496, %v622, %v631
        %v634 = vunpack.c.l.s4 1983009808
        %v635 = vunpack.c.0.s8 %v634
        %v636 = vperm.slane %v630, %v635
        %v638 = vunpack.c.l.s4 1983009808
        %v639 = vunpack.c.0.s8 %v638
        %v640 = vperm.slane %v632, %v639
        %v641 = vrot.slane %v624, 4
        %v642 = vsel %vm496, %v641, %v620
        %v643 = vrot.slane %v620, 4
        %v644 = vsel %vm496, %v624, %v643
        %v646 = vunpack.c.l.s4 1983009808
        %v647 = vunpack.c.0.s8 %v646
        %v648 = vperm.slane %v642, %v647
        %v650 = vunpack.c.l.s4 1983009808
        %v651 = vunpack.c.0.s8 %v650
        %v652 = vperm.slane %v644, %v651
        %v653 = vrot.slane %v648, 4
        %v654 = vsel %vm496, %v653, %v636
        %v655 = vrot.slane %v636, 4
        %v656 = vsel %vm496, %v648, %v655
        %v658 = vunpack.c.l.s4 1934713408
        %v659 = vunpack.c.0.s8 %v658
        %v660 = vperm.slane %v654, %v659
        %v662 = vunpack.c.l.s4 1934713408
        %v663 = vunpack.c.0.s8 %v662
        %v664 = vperm.slane %v656, %v663
        %v665 = vrot.slane %v652, 4
        %v666 = vsel %vm496, %v665, %v640
        %v667 = vrot.slane %v640, 4
        %v668 = vsel %vm496, %v652, %v667
        %v670 = vunpack.c.l.s4 1934713408
        %v671 = vunpack.c.0.s8 %v670
        %v672 = vperm.slane %v666, %v671
        %v674 = vunpack.c.l.s4 1934713408
        %v675 = vunpack.c.0.s8 %v674
        %v676 = vperm.slane %v668, %v675
        %v677 = vrot.slane %v660, 4
        %v678 = vsel %vm496, 0.0, %v677
        %v679 = vrot.slane %v664, 4
        %v680 = vsel %vm496, 0.0, %v679
        %v681 = vrot.slane %v672, 4
        %v682 = vsel %vm496, 0.0, %v681
        %v683 = vrot.slane %v676, 4
        %v684 = vsel %vm496, 0.0, %v683
        %v685 = vsel %vm496, %v679, %v660
        %v687 = vunpack.c.l.s4 1983009808
        %v688 = vunpack.c.0.s8 %v687
        %v689 = vperm.slane %v685, %v688
        %v690 = vrot.slane %v680, 4
        %v691 = vsel %vm496, %v690, %v678
        %v693 = vunpack.c.l.s4 1983009808
        %v694 = vunpack.c.0.s8 %v693
        %v695 = vperm.slane %v691, %v694
        %v696 = vsel %vm496, %v683, %v672
        %v698 = vunpack.c.l.s4 1983009808
        %v699 = vunpack.c.0.s8 %v698
        %v700 = vperm.slane %v696, %v699
        %v701 = vrot.slane %v684, 4
        %v702 = vsel %vm496, %v701, %v682
        %v704 = vunpack.c.l.s4 1983009808
        %v705 = vunpack.c.0.s8 %v704
        %v706 = vperm.slane %v702, %v705
        %v707 = vrot.slane %v695, 4
        %v708 = vsel %vm496, %v707, %v689
        %v709 = vrot.slane %v689, 4
        %v710 = vsel %vm496, %v695, %v709
        %v712 = vunpack.c.l.s4 1934713408
        %v713 = vunpack.c.0.s8 %v712
        %v714 = vperm.slane %v708, %v713
        %v716 = vunpack.c.l.s4 1934713408
        %v717 = vunpack.c.0.s8 %v716
        %v718 = vperm.slane %v710, %v717
        %v719 = vrot.slane %v706, 4
        %v720 = vsel %vm496, %v719, %v700
        %v721 = vrot.slane %v700, 4
        %v722 = vsel %vm496, %v706, %v721
        %v724 = vunpack.c.l.s4 1934713408
        %v725 = vunpack.c.0.s8 %v724
        %v726 = vperm.slane %v720, %v725
        %v728 = vunpack.c.l.s4 1934713408
        %v729 = vunpack.c.0.s8 %v728
        %v730 = vperm.slane %v722, %v729
        %v731 = vrot.slane %v726, 4
        %v732 = vsel %vm496, %v731, %v714
        %v733 = vrot.slane %v714, 4
        %v734 = vsel %vm496, %v726, %v733
        %v735 = vrot.slane %v730, 4
        %v736 = vsel %vm496, %v735, %v718
        %v737 = vrot.slane %v718, 4
        %v738 = vsel %vm496, %v730, %v737
        %v739 = vpack.c.bf16 %v732, %v732
        %v740 = vpack.c.bf16 %v734, %v734
        %v741 = vpack.c.bf16 %v736, %v736
        %v742 = vpack.c.bf16 %v738, %v738
        %743 = vrot.lane.b32.xlu0 %v481, 64
        %v744 = vpop.permute.xlu0 %743
        %745 = vrot.lane.b32.xlu0 %v612, 64
        %v746 = vpop.permute.xlu0 %745
        %747 = vrot.lane.b32.xlu0 %v614, 64
        %v748 = vpop.permute.xlu0 %747
        %749 = vrot.lane.b32.xlu0 %v616, 64
        %v750 = vpop.permute.xlu0 %749
        %v755 = vrot.slane %v748, 4
        %v756 = vsel %vm496, %v755, %v744
        %v757 = vrot.slane %v744, 4
        %v758 = vsel %vm496, %v748, %v757
        %v760 = vunpack.c.l.s4 1983009808
        %v761 = vunpack.c.0.s8 %v760
        %v762 = vperm.slane %v756, %v761
        %v764 = vunpack.c.l.s4 1983009808
        %v765 = vunpack.c.0.s8 %v764
        %v766 = vperm.slane %v758, %v765
        %v767 = vrot.slane %v750, 4
        %v768 = vsel %vm496, %v767, %v746
        %v769 = vrot.slane %v746, 4
        %v770 = vsel %vm496, %v750, %v769
        %v772 = vunpack.c.l.s4 1983009808
        %v773 = vunpack.c.0.s8 %v772
        %v774 = vperm.slane %v768, %v773
        %v776 = vunpack.c.l.s4 1983009808
        %v777 = vunpack.c.0.s8 %v776
        %v778 = vperm.slane %v770, %v777
        %v779 = vrot.slane %v774, 4
        %v780 = vsel %vm496, %v779, %v762
        %v781 = vrot.slane %v762, 4
        %v782 = vsel %vm496, %v774, %v781
        %v784 = vunpack.c.l.s4 1934713408
        %v785 = vunpack.c.0.s8 %v784
        %v786 = vperm.slane %v780, %v785
        %v788 = vunpack.c.l.s4 1934713408
        %v789 = vunpack.c.0.s8 %v788
        %v790 = vperm.slane %v782, %v789
        %v791 = vrot.slane %v778, 4
        %v792 = vsel %vm496, %v791, %v766
        %v793 = vrot.slane %v766, 4
        %v794 = vsel %vm496, %v778, %v793
        %v796 = vunpack.c.l.s4 1934713408
        %v797 = vunpack.c.0.s8 %v796
        %v798 = vperm.slane %v792, %v797
        %v800 = vunpack.c.l.s4 1934713408
        %v801 = vunpack.c.0.s8 %v800
        %v802 = vperm.slane %v794, %v801
        %v803 = vrot.slane %v786, 4
        %v804 = vsel %vm496, 0.0, %v803
        %v805 = vrot.slane %v790, 4
        %v806 = vsel %vm496, 0.0, %v805
        %v807 = vrot.slane %v798, 4
        %v808 = vsel %vm496, 0.0, %v807
        %v809 = vrot.slane %v802, 4
        %v810 = vsel %vm496, 0.0, %v809
        %v811 = vsel %vm496, %v805, %v786
        %v813 = vunpack.c.l.s4 1983009808
        %v814 = vunpack.c.0.s8 %v813
        %v815 = vperm.slane %v811, %v814
        %v816 = vrot.slane %v806, 4
        %v817 = vsel %vm496, %v816, %v804
        %v819 = vunpack.c.l.s4 1983009808
        %v820 = vunpack.c.0.s8 %v819
        %v821 = vperm.slane %v817, %v820
        %v822 = vsel %vm496, %v809, %v798
        %v824 = vunpack.c.l.s4 1983009808
        %v825 = vunpack.c.0.s8 %v824
        %v826 = vperm.slane %v822, %v825
        %v827 = vrot.slane %v810, 4
        %v828 = vsel %vm496, %v827, %v808
        %v830 = vunpack.c.l.s4 1983009808
        %v831 = vunpack.c.0.s8 %v830
        %v832 = vperm.slane %v828, %v831
        %v833 = vrot.slane %v821, 4
        %v834 = vsel %vm496, %v833, %v815
        %v835 = vrot.slane %v815, 4
        %v836 = vsel %vm496, %v821, %v835
        %v838 = vunpack.c.l.s4 1934713408
        %v839 = vunpack.c.0.s8 %v838
        %v840 = vperm.slane %v834, %v839
        %v842 = vunpack.c.l.s4 1934713408
        %v843 = vunpack.c.0.s8 %v842
        %v844 = vperm.slane %v836, %v843
        %v845 = vrot.slane %v832, 4
        %v846 = vsel %vm496, %v845, %v826
        %v847 = vrot.slane %v826, 4
        %v848 = vsel %vm496, %v832, %v847
        %v850 = vunpack.c.l.s4 1934713408
        %v851 = vunpack.c.0.s8 %v850
        %v852 = vperm.slane %v846, %v851
        %v854 = vunpack.c.l.s4 1934713408
        %v855 = vunpack.c.0.s8 %v854
        %v856 = vperm.slane %v848, %v855
        %v857 = vrot.slane %v852, 4
        %v858 = vsel %vm496, %v857, %v840
        %v859 = vrot.slane %v840, 4
        %v860 = vsel %vm496, %v852, %v859
        %v861 = vrot.slane %v856, 4
        %v862 = vsel %vm496, %v861, %v844
        %v863 = vrot.slane %v844, 4
        %v864 = vsel %vm496, %v856, %v863
        %v865 = vpack.c.bf16 %v858, %v858
        %v866 = vpack.c.bf16 %v860, %v860
        %v867 = vpack.c.bf16 %v862, %v862
        %v868 = vpack.c.bf16 %v864, %v864
        %vm869 = vcmask 64512
        %v871 = vsel %vm869, %v606, 0
        %v874 = vsel %vm869, %v739, 0
        %876 = vmatpush.bf16.xpose.msra.mxu0 0
        %877 = vmatpush.bf16.xpose.msra.mxu0 0
        %878 = vmatpush.bf16.xpose.msra.mxu0 0
        %879 = vmatpush.bf16.xpose.msra.mxu0 0
        %880 = vmatpush.bf16.xpose.msra.mxu0 0
        %881 = vmatpush.bf16.xpose.msra.mxu0 0
        %882 = vmatpush.bf16.xpose.msra.mxu0 0
        %883 = vmatpush.bf16.xpose.msra.mxu0 %v874
        %884 = vmatmul.bf16.gmra.mxu0 %v871
        %v885 = vpop.f32.mrf.mxu0
        %v886 = vadd.f32 0.0, %v885
        %v887 = vpop.f32.mrf.mxu0
        %888 = vdwg.mxu0
        %v890 = vsel %vm869, %v607, 0
        %v893 = vsel %vm869, %v740, 0
        %895 = vmatpush.bf16.xpose.msra.mxu0 0
        %896 = vmatpush.bf16.xpose.msra.mxu0 0
        %897 = vmatpush.bf16.xpose.msra.mxu0 0
        %898 = vmatpush.bf16.xpose.msra.mxu0 0
        %899 = vmatpush.bf16.xpose.msra.mxu0 0
        %900 = vmatpush.bf16.xpose.msra.mxu0 0
        %901 = vmatpush.bf16.xpose.msra.mxu0 0
        %902 = vmatpush.bf16.xpose.msra.mxu0 %v893
        %903 = vmatmul.bf16.gmra.mxu0 %v890
        %v904 = vpop.f32.mrf.mxu0
        %v905 = vadd.f32 0.0, %v904
        %v906 = vpop.f32.mrf.mxu0
        %907 = vdwg.mxu0
        %v909 = vsel %vm869, %v608, 0
        %v912 = vsel %vm869, %v741, 0
        %914 = vmatpush.bf16.xpose.msra.mxu0 0
        %915 = vmatpush.bf16.xpose.msra.mxu0 0
        %916 = vmatpush.bf16.xpose.msra.mxu0 0
        %917 = vmatpush.bf16.xpose.msra.mxu0 0
        %918 = vmatpush.bf16.xpose.msra.mxu0 0
        %919 = vmatpush.bf16.xpose.msra.mxu0 0
        %920 = vmatpush.bf16.xpose.msra.mxu0 0
        %921 = vmatpush.bf16.xpose.msra.mxu0 %v912
        %922 = vmatmul.bf16.gmra.mxu0 %v909
        %v923 = vpop.f32.mrf.mxu0
        %v924 = vadd.f32 0.0, %v923
        %v925 = vpop.f32.mrf.mxu0
        %926 = vdwg.mxu0
        %v928 = vsel %vm869, %v609, 0
        %v931 = vsel %vm869, %v742, 0
        %933 = vmatpush.bf16.xpose.msra.mxu0 0
        %934 = vmatpush.bf16.xpose.msra.mxu0 0
        %935 = vmatpush.bf16.xpose.msra.mxu0 0
        %936 = vmatpush.bf16.xpose.msra.mxu0 0
        %937 = vmatpush.bf16.xpose.msra.mxu0 0
        %938 = vmatpush.bf16.xpose.msra.mxu0 0
        %939 = vmatpush.bf16.xpose.msra.mxu0 0
        %940 = vmatpush.bf16.xpose.msra.mxu0 %v931
        %941 = vmatmul.bf16.gmra.mxu0 %v928
        %v942 = vpop.f32.mrf.mxu0
        %v943 = vadd.f32 0.0, %v942
        %v944 = vpop.f32.mrf.mxu0
        %945 = vdwg.mxu0
        %v946 = vlaneseq
        %v947 = vshrl.u32 %v946, 7
        %v948 = vlaneseq
        %v949 = vand.u32 %v948, 127
        %vm950 = vcmp.gt.s32.totalorder %v949, %v947
        %v951 = vsel %vm950, 1, 0
        %vm952 = vcmp.eq.s32.totalorder %v951, 1
        %v953 = vsel %vm952, -1e+30, %v886
        %v954 = vsel %vm952, -1e+30, %v905
        %v955 = vsel %vm952, -1e+30, %v924
        %v956 = vsel %vm952, -1e+30, %v943
        %v957 = vsel %vm869, %v953, -inf
        %958 = vmax.xlane.f32.xlu0 %v957
        %v959 = vpop.xlane.xlu0 %958
        %v960 = vsel %vm869, %v954, -inf
        %961 = vmax.xlane.f32.xlu0 %v960
        %v962 = vpop.xlane.xlu0 %961
        %v963 = vsel %vm869, %v955, -inf
        %964 = vmax.xlane.f32.xlu0 %v963
        %v965 = vpop.xlane.xlu0 %964
        %v966 = vsel %vm869, %v956, -inf
        %967 = vmax.xlane.f32.xlu0 %v966
        %v968 = vpop.xlane.xlu0 %967
        %v969 = vsub.f32 %v953, %v959
        %v970 = vsub.f32 %v954, %v962
        %v971 = vsub.f32 %v955, %v965
        %v972 = vsub.f32 %v956, %v968
        %v973 = vmul.f32 %v969, 1.442695
        %v974 = vpow.pop %v973
        %v975 = vmul.f32 %v970, 1.442695
        %v976 = vpow.pop %v975
        %v977 = vmul.f32 %v971, 1.442695
        %v978 = vpow.pop %v977
        %v979 = vmul.f32 %v972, 1.442695
        %v980 = vpow.pop %v979
        %v981 = vsel %vm869, %v974, 0.0
        %982 = vadd.xlane.f32.xlu0 %v981
        %v983 = vpop.xlane.xlu0 %982
        %v984 = vsel %vm869, %v976, 0.0
        %985 = vadd.xlane.f32.xlu0 %v984
        %v986 = vpop.xlane.xlu0 %985
        %v987 = vsel %vm869, %v978, 0.0
        %988 = vadd.xlane.f32.xlu0 %v987
        %v989 = vpop.xlane.xlu0 %988
        %v990 = vsel %vm869, %v980, 0.0
        %991 = vadd.xlane.f32.xlu0 %v990
        %v992 = vpop.xlane.xlu0 %991
        %v993 = vrcp.pop %v983
        %v994 = vrcp.pop %v986
        %v995 = vrcp.pop %v989
        %v996 = vrcp.pop %v992
        %v997 = vmul.f32 %v974, %v993
        %v998 = vmul.f32 %v976, %v994
        %v999 = vmul.f32 %v978, %v995
        %v1000 = vmul.f32 %v980, %v996
        %v1001 = vpack.c.bf16 %v997, %v997
        %v1002 = vpack.c.bf16 %v998, %v998
        %v1003 = vpack.c.bf16 %v999, %v999
        %v1004 = vpack.c.bf16 %v1000, %v1000
        %v1006 = vsel %vm869, %v1001, 0
        %vm1008 = vcmask 1043456
        %v1010 = vsel %vm1008, %v865, 0
        %1012 = vmatpush.bf16.msra.mxu0 0
        %1013 = vmatpush.bf16.msra.mxu0 0
        %1014 = vmatpush.bf16.msra.mxu0 0
        %1015 = vmatpush.bf16.msra.mxu0 0
        %1016 = vmatpush.bf16.msra.mxu0 0
        %1017 = vmatpush.bf16.msra.mxu0 0
        %1018 = vmatpush.bf16.msra.mxu0 0
        %1019 = vmatpush.bf16.msra.mxu0 %v1010
        %1020 = vmatmul.bf16.gmra.mxu0 %v1006
        %v1021 = vpop.f32.mrf.mxu0
        %v1022 = vadd.f32 0.0, %v1021
        %v1023 = vpop.f32.mrf.mxu0
        %1024 = vdwg.mxu0
        %v1026 = vsel %vm869, %v1002, 0
        %v1029 = vsel %vm1008, %v866, 0
        %1031 = vmatpush.bf16.msra.mxu0 0
        %1032 = vmatpush.bf16.msra.mxu0 0
        %1033 = vmatpush.bf16.msra.mxu0 0
        %1034 = vmatpush.bf16.msra.mxu0 0
        %1035 = vmatpush.bf16.msra.mxu0 0
        %1036 = vmatpush.bf16.msra.mxu0 0
        %1037 = vmatpush.bf16.msra.mxu0 0
        %1038 = vmatpush.bf16.msra.mxu0 %v1029
        %1039 = vmatmul.bf16.gmra.mxu0 %v1026
        %v1040 = vpop.f32.mrf.mxu0
        %v1041 = vadd.f32 0.0, %v1040
        %v1042 = vpop.f32.mrf.mxu0
        %1043 = vdwg.mxu0
        %v1045 = vsel %vm869, %v1003, 0
        %v1048 = vsel %vm1008, %v867, 0
        %1050 = vmatpush.bf16.msra.mxu0 0
        %1051 = vmatpush.bf16.msra.mxu0 0
        %1052 = vmatpush.bf16.msra.mxu0 0
        %1053 = vmatpush.bf16.msra.mxu0 0
        %1054 = vmatpush.bf16.msra.mxu0 0
        %1055 = vmatpush.bf16.msra.mxu0 0
        %1056 = vmatpush.bf16.msra.mxu0 0
        %1057 = vmatpush.bf16.msra.mxu0 %v1048
        %1058 = vmatmul.bf16.gmra.mxu0 %v1045
        %v1059 = vpop.f32.mrf.mxu0
        %v1060 = vadd.f32 0.0, %v1059
        %v1061 = vpop.f32.mrf.mxu0
        %1062 = vdwg.mxu0
        %v1064 = vsel %vm869, %v1004, 0
        %v1067 = vsel %vm1008, %v868, 0
        %1069 = vmatpush.bf16.msra.mxu0 0
        %1070 = vmatpush.bf16.msra.mxu0 0
        %1071 = vmatpush.bf16.msra.mxu0 0
        %1072 = vmatpush.bf16.msra.mxu0 0
        %1073 = vmatpush.bf16.msra.mxu0 0
        %1074 = vmatpush.bf16.msra.mxu0 0
        %1075 = vmatpush.bf16.msra.mxu0 0
        %1076 = vmatpush.bf16.msra.mxu0 %v1067
        %1077 = vmatmul.bf16.gmra.mxu0 %v1064
        %v1078 = vpop.f32.mrf.mxu0
        %v1079 = vadd.f32 0.0, %v1078
        %v1080 = vpop.f32.mrf.mxu0
        %1081 = vdwg.mxu0
        %v1082 = vrot.slane %v1060, 4
        %v1083 = vsel %vm496, %v1082, %v1022
        %v1084 = vrot.slane %v1022, 4
        %v1085 = vsel %vm496, %v1060, %v1084
        %v1087 = vunpack.c.l.s4 1983009808
        %v1088 = vunpack.c.0.s8 %v1087
        %v1089 = vperm.slane %v1083, %v1088
        %v1091 = vunpack.c.l.s4 1983009808
        %v1092 = vunpack.c.0.s8 %v1091
        %v1093 = vperm.slane %v1085, %v1092
        %v1094 = vrot.slane %v1079, 4
        %v1095 = vsel %vm496, %v1094, %v1041
        %v1096 = vrot.slane %v1041, 4
        %v1097 = vsel %vm496, %v1079, %v1096
        %v1099 = vunpack.c.l.s4 1983009808
        %v1100 = vunpack.c.0.s8 %v1099
        %v1101 = vperm.slane %v1095, %v1100
        %v1103 = vunpack.c.l.s4 1983009808
        %v1104 = vunpack.c.0.s8 %v1103
        %v1105 = vperm.slane %v1097, %v1104
        %v1106 = vrot.slane %v1101, 4
        %v1107 = vsel %vm496, %v1106, %v1089
        %v1108 = vrot.slane %v1089, 4
        %v1109 = vsel %vm496, %v1101, %v1108
        %v1111 = vunpack.c.l.s4 1934713408
        %v1112 = vunpack.c.0.s8 %v1111
        %v1113 = vperm.slane %v1107, %v1112
        %v1115 = vunpack.c.l.s4 1934713408
        %v1116 = vunpack.c.0.s8 %v1115
        %v1117 = vperm.slane %v1109, %v1116
        %v1118 = vrot.slane %v1105, 4
        %v1119 = vsel %vm496, %v1118, %v1093
        %v1120 = vrot.slane %v1093, 4
        %v1121 = vsel %vm496, %v1105, %v1120
        %v1123 = vunpack.c.l.s4 1934713408
        %v1124 = vunpack.c.0.s8 %v1123
        %v1125 = vperm.slane %v1119, %v1124
        %v1127 = vunpack.c.l.s4 1934713408
        %v1128 = vunpack.c.0.s8 %v1127
        %v1129 = vperm.slane %v1121, %v1128
        %v1130 = vrot.slane %v1113, 4
        %v1131 = vsel %vm496, 0.0, %v1130
        %v1132 = vrot.slane %v1117, 4
        %v1133 = vsel %vm496, 0.0, %v1132
        %v1134 = vrot.slane %v1125, 4
        %v1135 = vsel %vm496, 0.0, %v1134
        %v1136 = vrot.slane %v1129, 4
        %v1137 = vsel %vm496, 0.0, %v1136
        %v1138 = vsel %vm496, %v1132, %v1113
        %v1140 = vunpack.c.l.s4 1983009808
        %v1141 = vunpack.c.0.s8 %v1140
        %v1142 = vperm.slane %v1138, %v1141
        %v1143 = vrot.slane %v1133, 4
        %v1144 = vsel %vm496, %v1143, %v1131
        %v1146 = vunpack.c.l.s4 1983009808
        %v1147 = vunpack.c.0.s8 %v1146
        %v1148 = vperm.slane %v1144, %v1147
        %v1149 = vsel %vm496, %v1136, %v1125
        %v1151 = vunpack.c.l.s4 1983009808
        %v1152 = vunpack.c.0.s8 %v1151
        %v1153 = vperm.slane %v1149, %v1152
        %v1154 = vrot.slane %v1137, 4
        %v1155 = vsel %vm496, %v1154, %v1135
        %v1157 = vunpack.c.l.s4 1983009808
        %v1158 = vunpack.c.0.s8 %v1157
        %v1159 = vperm.slane %v1155, %v1158
        %v1160 = vrot.slane %v1148, 4
        %v1161 = vsel %vm496, %v1160, %v1142
        %v1162 = vrot.slane %v1142, 4
        %v1163 = vsel %vm496, %v1148, %v1162
        %v1165 = vunpack.c.l.s4 1934713408
        %v1166 = vunpack.c.0.s8 %v1165
        %v1167 = vperm.slane %v1161, %v1166
        %v1169 = vunpack.c.l.s4 1934713408
        %v1170 = vunpack.c.0.s8 %v1169
        %v1171 = vperm.slane %v1163, %v1170
        %v1172 = vrot.slane %v1159, 4
        %v1173 = vsel %vm496, %v1172, %v1153
        %v1174 = vrot.slane %v1153, 4
        %v1175 = vsel %vm496, %v1159, %v1174
        %v1177 = vunpack.c.l.s4 1934713408
        %v1178 = vunpack.c.0.s8 %v1177
        %v1179 = vperm.slane %v1173, %v1178
        %v1181 = vunpack.c.l.s4 1934713408
        %v1182 = vunpack.c.0.s8 %v1181
        %v1183 = vperm.slane %v1175, %v1182
        %v1184 = vrot.slane %v1179, 4
        %v1185 = vsel %vm496, %v1184, %v1167
        %v1186 = vrot.slane %v1167, 4
        %v1187 = vsel %vm496, %v1179, %v1186
        %v1188 = vrot.slane %v1183, 4
        %v1189 = vsel %vm496, %v1188, %v1171
        %v1190 = vrot.slane %v1171, 4
        %v1191 = vsel %vm496, %v1183, %v1190
        %1193 = vrot.lane.b32.xlu0 %v1187, 8
        %v1194 = vpop.permute.xlu0 %1193
        %1197 = vrot.lane.b32.xlu0 %v1189, 16
        %v1198 = vpop.permute.xlu0 %1197
        %1201 = vrot.lane.b32.xlu0 %v1191, 24
        %v1202 = vpop.permute.xlu0 %1201
        %v1204 = vsel %vm869, %v1185, %v1194
        %vm1205 = vcmask 130048
        %v1206 = vsel %vm1205, %v1204, %v1198
        %vm1207 = vcmask 195584
        %v1208 = vsel %vm1207, %v1206, %v1202
        %v1209 = vpack.c.bf16 %v1208, %v1208
        %v1210 = vld [vmem:[%s2] sm:$0xf]
        %v1211 = vld [vmem:[%s2 + $0x4] sm:$0xf]
        %v1212 = vld [vmem:[%s2 + $0x8] sm:$0xf]
        %v1213 = vld [vmem:[%s2 + $0xc] sm:$0xf]
        %v1214 = vld [vmem:[%s3] sm:$0x1]
        %v1216 = vperm.slane %v1214, 0
        %v1222 = vunpack.c.l.b16 %v1210
        %v1223 = vunpack.c.l.b16 %v1211
        %v1224 = vunpack.c.l.b16 %v1212
        %v1225 = vunpack.c.l.b16 %v1213
        %v1226 = vpack.c.b16 %v1223, %v1222
        %v1227 = vpack.c.b16 %v1225, %v1224
        %v1231 = vsel %vm413, %v1209, 0
        %1233 = vmatpush.bf16.msra.mxu0 0
        %1234 = vmatpush.bf16.msra.mxu0 0
        %1235 = vmatpush.bf16.msra.mxu0 0
        %1236 = vmatpush.bf16.msra.mxu0 0
        %1237 = vmatpush.bf16.msra.mxu0 0
        %1238 = vmatpush.bf16.msra.mxu0 0
        %1239 = vmatpush.bf16.msra.mxu0 %v1227
        %1240 = vmatpush.bf16.msra.mxu0 %v1226
        %1241 = vmatmul.bf16.gmra.mxu0 %v1231
        %v1242 = vpop.f32.mrf.mxu0
        %v1243 = vadd.f32 %v1216, %v1242
        %v1244 = vpop.f32.mrf.mxu0
        %1245 = vdwg.mxu0
        %v1246 = vadd.f32 %v410, %v1243
        %v1247 = vld [vmem:[%s10] sm:$0x1]
        %v1248 = vld [vmem:[%s11] sm:$0x1]
        %v1249 = vsel %vm413, %v1246, 0.0
        %1250 = vadd.xlane.f32.xlu0 %v1249
        %v1251 = vpop.xlane.xlu0 %1250
        %v1252 = vmul.f32 %v1251, %v423
        %v1253 = vsub.f32 %v1246, %v1252
        %v1254 = vmul.f32 %v1253, %v1253
        %v1255 = vsel %vm413, %v1254, 0.0
        %1256 = vadd.xlane.f32.xlu0 %v1255
        %v1257 = vpop.xlane.xlu0 %1256
        %v1258 = vmul.f32 %v1257, %v423
        %v1259 = vadd.f32 %v1258, 1e-05
        %v1260 = vrsqrt.pop %v1259
        %v1261 = vmul.f32 %v1260, %v1259
        %v1262 = vmul.f32 %v1261, %v1260
        %v1263 = vmul.f32 0.5, %v1262
        %v1264 = vsub.f32 1.5, %v1263
        %v1265 = vmul.f32 %v1260, %v1264
        %vm1266 = vweird.f32 %v1259
        %vm1267 = vweird.f32 %v1260
        %vm1268 = vmor %vm1266, %vm1267
        %v1269 = vsel %vm1268, %v1260, %v1265
        %v1270 = vmul.f32 %v1253, %v1269
        %v1272 = vperm.slane %v1247, 0
        %v1274 = vmul.f32 %v1272, %v1270
        %v1276 = vperm.slane %v1248, 0
        %v1278 = vadd.f32 %v1274, %v1276
        %v1279 = vpack.c.bf16 %v1278, %v1278
        %v1280 = vld [vmem:[%s4] sm:$0xf]
        %v1281 = vld [vmem:[%s4 + $0x4] sm:$0xf]
        %v1282 = vld [vmem:[%s4 + $0x8] sm:$0xf]
        %v1283 = vld [vmem:[%s4 + $0xc] sm:$0xf]
        %v1284 = vld [vmem:[%s5] sm:$0x1]
        %v1286 = vperm.slane %v1284, 0
        %v1292 = vunpack.c.l.b16 %v1280
        %v1293 = vunpack.c.l.b16 %v1281
        %v1294 = vunpack.c.l.b16 %v1282
        %v1295 = vunpack.c.l.b16 %v1283
        %v1296 = vpack.c.b16 %v1293, %v1292
        %v1297 = vpack.c.b16 %v1295, %v1294
        %v1301 = vsel %vm413, %v1279, 0
        %1303 = vmatpush.bf16.msra.mxu0 0
        %1304 = vmatpush.bf16.msra.mxu0 0
        %1305 = vmatpush.bf16.msra.mxu0 0
        %1306 = vmatpush.bf16.msra.mxu0 0
        %1307 = vmatpush.bf16.msra.mxu0 0
        %1308 = vmatpush.bf16.msra.mxu0 0
        %1309 = vmatpush.bf16.msra.mxu0 %v1297
        %1310 = vmatpush.bf16.msra.mxu0 %v1296
        %1311 = vmatmul.bf16.gmra.mxu0 %v1301
        %v1312 = vpop.f32.mrf.mxu0
        %v1313 = vadd.f32 %v1286, %v1312
        %v1314 = vpop.f32.mrf.mxu0
        %1315 = vdwg.mxu0
        %v1316 = vmul.f32 %v1313, 0.5
        %v1317 = vmul.f32 %v1313, %v1313
        %v1318 = vmul.f32 %v1313, %v1317
        %v1319 = vmul.f32 %v1318, 0.044715
        %v1320 = vadd.f32 %v1313, %v1319
        %v1321 = vmul.f32 %v1320, 0.7978846
        %v1322 = vtanh.pop %v1321
        %v1323 = vadd.f32 %v1322, 1.0
        %v1324 = vmul.f32 %v1316, %v1323
        %v1325 = vpack.c.bf16 %v1324, %v1324
        %v1326 = vld [vmem:[%s6] sm:$0xf]
        %v1327 = vld [vmem:[%s6 + $0x4] sm:$0xf]
        %v1328 = vld [vmem:[%s6 + $0x8] sm:$0xf]
        %v1329 = vld [vmem:[%s6 + $0xc] sm:$0xf]
        %v1330 = vld [vmem:[%s6 + $0x10] sm:$0xf]
        %v1331 = vld [vmem:[%s6 + $0x14] sm:$0xf]
        %v1332 = vld [vmem:[%s6 + $0x18] sm:$0xf]
        %v1333 = vld [vmem:[%s6 + $0x1c] sm:$0xf]
        %v1334 = vld [vmem:[%s6 + $0x20] sm:$0xf]
        %v1335 = vld [vmem:[%s6 + $0x24] sm:$0xf]
        %v1336 = vld [vmem:[%s6 + $0x28] sm:$0xf]
        %v1337 = vld [vmem:[%s6 + $0x2c] sm:$0xf]
        %v1338 = vld [vmem:[%s6 + $0x30] sm:$0xf]
        %v1339 = vld [vmem:[%s6 + $0x34] sm:$0xf]
        %v1340 = vld [vmem:[%s6 + $0x38] sm:$0xf]
        %v1341 = vld [vmem:[%s6 + $0x3c] sm:$0xf]
        %v1342 = vld [vmem:[%s7] sm:$0x1]
        %v1344 = vperm.slane %v1342, 0
        %v1362 = vunpack.c.l.b16 %v1326
        %v1363 = vunpack.c.l.b16 %v1327
        %v1364 = vunpack.c.l.b16 %v1328
        %v1365 = vunpack.c.l.b16 %v1329
        %v1366 = vunpack.c.l.b16 %v1330
        %v1367 = vunpack.c.l.b16 %v1331
        %v1368 = vunpack.c.l.b16 %v1332
        %v1369 = vunpack.c.l.b16 %v1333
        %v1370 = vunpack.c.l.b16 %v1334
        %v1371 = vunpack.c.l.b16 %v1335
        %v1372 = vunpack.c.l.b16 %v1336
        %v1373 = vunpack.c.l.b16 %v1337
        %v1374 = vunpack.c.l.b16 %v1338
        %v1375 = vunpack.c.l.b16 %v1339
        %v1376 = vunpack.c.l.b16 %v1340
        %v1377 = vunpack.c.l.b16 %v1341
        %v1378 = vpack.c.b16 %v1363, %v1362
        %v1379 = vpack.c.b16 %v1365, %v1364
        %v1380 = vpack.c.b16 %v1367, %v1366
        %v1381 = vpack.c.b16 %v1369, %v1368
        %v1382 = vpack.c.b16 %v1371, %v1370
        %v1383 = vpack.c.b16 %v1373, %v1372
        %v1384 = vpack.c.b16 %v1375, %v1374
        %v1385 = vpack.c.b16 %v1377, %v1376
        %1394 = vmatpush.bf16.msra.mxu0 %v1385
        %1395 = vmatpush.bf16.msra.mxu0 %v1384
        %1396 = vmatpush.bf16.msra.mxu0 %v1383
        %1397 = vmatpush.bf16.msra.mxu0 %v1382
        %1398 = vmatpush.bf16.msra.mxu0 %v1381
        %1399 = vmatpush.bf16.msra.mxu0 %v1380
        %1400 = vmatpush.bf16.msra.mxu0 %v1379
        %1401 = vmatpush.bf16.msra.mxu0 %v1378
        %1402 = vmatmul.bf16.gmra.mxu0 %v1325
        %v1403 = vpop.f32.mrf.mxu0
        %v1404 = vadd.f32 %v1344, %v1403
        %v1405 = vpop.f32.mrf.mxu0
        %1406 = vdwg.mxu0
        %v1407 = vadd.f32 %v1246, %v1404
        %1408 = vst.msk [vmem:[%s404] sm:$0xff] %vm413, %v1407
        %s1409 = sand.u32 %s291, 1
        %s1410 = scalar_lea.sflag [#allocation3], %s1409
        %s1411 = sand.u32 %s291, 1
        %s1412 = smul.addr %s1411, 8
        %s1413 = scalar_lea.vmem [#allocation2], %s1412
        // Predicated region
        $region69: #{tpu_custom_call.1} parent=67 // pred_check
          %p1414 = pneg %p301
        $region70: #{tpu_custom_call.1} parent=67 // pred_check_branch
          %1416 = sbr.rel (%p1414) target = $region72
        $region71: #{tpu_custom_call.1} parent=67 // pred_region
          %1418 = vsyncadd %s1410, 0
          %s1419 = smul.addr %s26, 8
          %s1420 = scalar_lea.hbm %s12, %s1419
          %s1422 = sshll.u32 %s1413, 4
          %s1423 = int_to_ptr.vmem [resolvable:$true] %s1422
          %s1424 = sshll.u32 %s1420, 4
          %s1425 = int_to_ptr.hbm [resolvable:$true] %s1424
          %1427 = dma.vmem_to_hbm [thread:$0]  %s1423, 128, %s1425, %s1410
        $region72: #{tpu_custom_call.1} parent=67 // pred_fallthru
          _
      $region68: #{tpu_custom_call.1} parent=5 // pred_fallthru
        _
      %p1428 = scmp.le.s32.totalorder 2, %s21
      // Predicated region
      $region73: #{tpu_custom_call.1} parent=5 // pred_check
        %p1429 = pneg %p1428
      $region74: #{tpu_custom_call.1} parent=5 // pred_check_branch
        %1431 = sbr.rel (%p1429) target = $region76
      $region75: #{tpu_custom_call.1} parent=5 // pred_region
        %s1432 = ssub.s32 %s21, 2
        // Predicated region
        $region77: #{tpu_custom_call.1} parent=75 // pred_check
          %p1433 = pneg %p307
        $region78: #{tpu_custom_call.1} parent=75 // pred_check_branch
          %1435 = sbr.rel (%p1433) target = $region80
        $region79: #{tpu_custom_call.1} parent=75 // pred_region
          %s1436 = sand.u32 %s292, 1
          %s1437 = scalar_lea.sflag [#allocation3], %s1436
          %s1438 = sand.u32 %s292, 1
          %s1439 = smul.addr %s1438, 8
          %s1440 = scalar_lea.vmem [#allocation2], %s1439
          %1442 = dma.done %s1437, 128
        $region80: #{tpu_custom_call.1} parent=75 // pred_fallthru
          _
      $region76: #{tpu_custom_call.1} parent=5 // pred_fallthru
        _
    $region6: #{tpu_custom_call.1} parent=1 // loop_footer
      %s25 = sadd.s32 1, %s21
    $region7: #{tpu_custom_call.1} parent=1 // loop_footer_branch
      %20 = sbr.rel target = $region3
    $region8: #{tpu_custom_call.1} parent=1 // loop_exit
      _
    %1443 = vsyncpa [#allocation3], 1
    %s1444 = scalar_lea.sflag [#allocation3], 1
    %1445 = vsyncpa %s1444, 1

</llo_original>
